<compile_context>
chip_gen: v7x
topology: tpu7x:2x2x1
jax: 0.10.0
libtpu: 0.0.40
codegen_flags: <defaults>
</compile_context>

<pallas_src>
import jax
import jax.numpy as jnp
from jax.experimental import pallas as pl
from jax.experimental.pallas import tpu as pltpu


HIDDEN = 256                 # hidden width of both MLPs (fixed by the module)
MXU_DTYPE = jnp.bfloat16     # matmul-input dtype for the bf16 paths
MAX_TB = 2048                # upper bound on the batch tile
VMEM_BUDGET = 24 << 20       # target live-VMEM for blocked I/O + temporaries


# ----------------------------------------------------------------------------
# Kernel
# ----------------------------------------------------------------------------
def _coupling_kernel(x_ref, w1_ref, b1_ref, w2s_ref, b2s_ref, w2t_ref, b2t_ref,
                     y2_ref, s_ref, logdet_ref):
    half = x_ref.shape[1] // 2
    x1 = x_ref[:, :half]                       # lane-aligned views of the
    x2 = x_ref[:, half:]                       # single full-width x block

    # Fused first layer of scale_net + translate_net: one MXU pass over
    # (tb, H) x (H, 2*HIDDEN), bf16 inputs, f32 accumulation.
    hid = jnp.dot(x1.astype(w1_ref.dtype), w1_ref[...],
                  preferred_element_type=jnp.float32)
    hid = jnp.maximum(hid + b1_ref[...], 0.0)  # bias + ReLU in f32

    # Scale-path second layer in f32 (feeds exp(s) and the logdet sum).
    s = jnp.dot(hid[:, :HIDDEN], w2s_ref[...],
                preferred_element_type=jnp.float32) + b2s_ref[...]
    # Translate-path second layer in bf16 (additive, less precision-critical).
    t = jnp.dot(hid[:, HIDDEN:].astype(w2t_ref.dtype), w2t_ref[...],
                preferred_element_type=jnp.float32) + b2t_ref[...]

    y2 = x2 * jnp.exp(s) + t                   # affine coupling in f32

    # x1 passthrough is handled by aliasing x -> y; only write the y2 half.
    y2_ref[...] = y2.astype(y2_ref.dtype)
    s_ref[...] = s.astype(s_ref.dtype)
    logdet_ref[...] = jnp.sum(s, axis=1, keepdims=True).astype(logdet_ref.dtype)


# ----------------------------------------------------------------------------
# Tiling / VMEM policy
# ----------------------------------------------------------------------------
def _round_up(x, m):
    return (x + m - 1) // m * m


def _per_row_vmem_bytes(H):
    # Double-buffered I/O blocks (x full width, y2, s, lane-padded logdet)
    # plus f32 temporaries (hid, s, t, exp(s), y2) per batch row.
    io = 2 * (2 * H * 4 + H * 4 + H * 4 + 128 * 4)
    tmp = 2 * HIDDEN * 4 + 6 * H * 4
    return io + tmp


def _weights_vmem_bytes(H):
    return 2 * (2 * HIDDEN * H * 2 + 2 * HIDDEN * 4      # fused w1 (bf16) + b1
                + HIDDEN * H * 4 + H * 4                  # w2s (f32) + b2s
                + HIDDEN * H * 2 + H * 4)                 # w2t (bf16) + b2t


def _pick_batch_tile(B, H, vmem_budget_bytes=VMEM_BUDGET):
    """VMEM-aware batch tile; never falls back to tb=8 or the whole batch."""
    cap = max(8, (vmem_budget_bytes // _per_row_vmem_bytes(H)) // 8 * 8)
    tb = min(MAX_TB, cap)
    # At least 2 grid steps when the batch allows it (v7x megacore).
    tb = min(tb, max(8, _round_up(-(-B // 2), 8)))
    return tb


# ----------------------------------------------------------------------------
# Wrapper
# ----------------------------------------------------------------------------
def prepare_params(params):
    """One-time weight fusion / casting (hoisted out of the per-call forward)."""
    H = params["w1s"].shape[0]
    return dict(
        w1=jnp.concatenate([params["w1s"], params["w1t"]], axis=1).astype(MXU_DTYPE),
        b1=jnp.concatenate([params["b1s"], params["b1t"]]).reshape(1, 2 * HIDDEN)
            .astype(jnp.float32),
        w2s=params["w2s"].astype(jnp.float32),          # f32: precision-critical
        b2s=params["b2s"].reshape(1, H).astype(jnp.float32),
        w2t=params["w2t"].astype(MXU_DTYPE),
        b2t=params["b2t"].reshape(1, H).astype(jnp.float32),
    )


def affine_coupling_forward(x, prepared, *, tb=None):
    """Forward of AffineCouplingLayer.

    Args:
      x: (B, D) float32, D even, D // 2 a multiple of 128.  Donate x at the
         jit boundary (donate_argnums=(0,)) so the x->y alias is a true in-place
         reuse; without donation XLA copies x first (correct, but slower).
      prepared: output of prepare_params().
      tb: optional static batch-tile override (multiple of 8).
    Returns:
      y: (B, D) = concat([x1, x2 * exp(s) + t], axis=1)
      s: (B, H)
      logdet: (B,) = s.sum(axis=1)
    """
    B, D = x.shape
    H = D // 2
    assert 2 * H == D, "input_dim must be even"
    assert H % 128 == 0, "D // 2 must be a multiple of 128 (lane alignment)"

    if tb is None:
        tb = _pick_batch_tile(B, H)
    assert tb % 8 == 0 and tb > 0, "batch tile must be a positive multiple of 8"

    # Pad the batch to a multiple of the tile (no tb=8 / whole-batch fallbacks).
    Bp = pl.cdiv(B, tb) * tb
    if Bp != B:
        x = jnp.pad(x, ((0, Bp - B), (0, 0)))
    grid = (Bp // tb,)

    vmem_est = tb * _per_row_vmem_bytes(H) + _weights_vmem_bytes(H)
    vmem_limit = min(48 << 20, max(32 << 20, 2 * vmem_est))

    def resident(shape):                      # weights DMA'd once, VMEM-resident
        return pl.BlockSpec(shape, lambda i: (0, 0))

    y, s, logdet = pl.pallas_call(
        _coupling_kernel,
        out_shape=(
            jax.ShapeDtypeStruct((Bp, D), x.dtype),        # y (aliased to x)
            jax.ShapeDtypeStruct((Bp, H), jnp.float32),    # s
            jax.ShapeDtypeStruct((Bp, 1), jnp.float32),    # logdet column
        ),
        grid=grid,
        in_specs=[
            pl.BlockSpec((tb, D), lambda i: (i, 0)),       # full-width x block
            resident((H, 2 * HIDDEN)),                     # fused w1 (bf16)
            resident((1, 2 * HIDDEN)),                     # fused b1
            resident((HIDDEN, H)),                         # w2s (f32)
            resident((1, H)),                              # b2s
            resident((HIDDEN, H)),                         # w2t (bf16)
            resident((1, H)),                              # b2t
        ],
        out_specs=(
            pl.BlockSpec((tb, H), lambda i: (i, 1)),       # write only y2 half
            pl.BlockSpec((tb, H), lambda i: (i, 0)),
            pl.BlockSpec((tb, 1), lambda i: (i, 0)),
        ),
        input_output_aliases={0: 0},                       # x1 passthrough free
        compiler_params=pltpu.CompilerParams(
            dimension_semantics=("parallel",),
            vmem_limit_bytes=int(vmem_limit)),
    )(x, prepared["w1"], prepared["b1"], prepared["w2s"], prepared["b2s"],
      prepared["w2t"], prepared["b2t"])

    if Bp != B:
        y, s, logdet = y[:B], s[:B], logdet[:B]
    return y, s, logdet[:, 0]


# ----------------------------------------------------------------------------
# Parameter init + references
# ----------------------------------------------------------------------------
def init_params(key, input_dim):
    """Deterministic parameter init (shapes match the PyTorch module)."""
    H = input_dim // 2
    keys = jax.random.split(key, 8)

    def lin(kw, kb, fan_in, fan_out):
        bound = 1.0 / jnp.sqrt(fan_in)
        w = jax.random.uniform(kw, (fan_in, fan_out), jnp.float32, -bound, bound)
        b = jax.random.uniform(kb, (fan_out,), jnp.float32, -bound, bound)
        return w, b

    w1s, b1s = lin(keys[0], keys[1], H, HIDDEN)
    w2s, b2s = lin(keys[2], keys[3], HIDDEN, H)
    w1t, b1t = lin(keys[4], keys[5], H, HIDDEN)
    w2t, b2t = lin(keys[6], keys[7], HIDDEN, H)
    return dict(w1s=w1s, b1s=b1s, w2s=w2s, b2s=b2s,
                w1t=w1t, b1t=b1t, w2t=w2t, b2t=b2t)


def reference_forward_f32(x, params):
    """Pure-f32 reference (matches the PyTorch module semantics exactly)."""
    H = x.shape[1] // 2
    x1, x2 = x[:, :H], x[:, H:]
    h_s = jnp.maximum(x1 @ params["w1s"] + params["b1s"], 0.0)
    s = h_s @ params["w2s"] + params["b2s"]
    h_t = jnp.maximum(x1 @ params["w1t"] + params["b1t"], 0.0)
    t = h_t @ params["w2t"] + params["b2t"]
    y2 = x2 * jnp.exp(s) + t
    return jnp.concatenate([x1, y2], axis=1), s, jnp.sum(s, axis=1)


def reference_forward_mxu(x, params, mxu_dtype=MXU_DTYPE):
    """Reference with the same mixed-precision structure as the kernel."""
    H = x.shape[1] // 2
    x1, x2 = x[:, :H], x[:, H:]
    x1b = x1.astype(mxu_dtype)
    h_s = jnp.maximum(
        jnp.dot(x1b, params["w1s"].astype(mxu_dtype),
                preferred_element_type=jnp.float32) + params["b1s"], 0.0)
    h_t = jnp.maximum(
        jnp.dot(x1b, params["w1t"].astype(mxu_dtype),
                preferred_element_type=jnp.float32) + params["b1t"], 0.0)
    s = jnp.dot(h_s, params["w2s"], preferred_element_type=jnp.float32,
                precision=jax.lax.Precision.HIGHEST) + params["b2s"]
    t = jnp.dot(h_t.astype(mxu_dtype), params["w2t"].astype(mxu_dtype),
                preferred_element_type=jnp.float32) + params["b2t"]
    y2 = x2 * jnp.exp(s) + t
    return jnp.concatenate([x1, y2], axis=1), s, jnp.sum(s, axis=1)


# ----------------------------------------------------------------------------
# Demo / self-test
# ----------------------------------------------------------------------------
if __name__ == "__main__":
    B = 512
    INPUT_DIM = 256   # halves are H = 128 -> smallest lane-aligned width

    key = jax.random.PRNGKey(0)
    kx, kp = jax.random.split(key)
    x = jax.random.normal(kx, (B, INPUT_DIM), dtype=jnp.float32)
    params = init_params(kp, INPUT_DIM)
    prepared = prepare_params(params)

    # Compute references first: x is donated to the kernel call below.
    y_m, s_m, ld_m = reference_forward_mxu(x, params)
    y_f, s_f, ld_f = reference_forward_f32(x, params)
    jax.block_until_ready((y_m, s_m, ld_m, y_f, s_f, ld_f))

    fwd = jax.jit(affine_coupling_forward, static_argnames=("tb",),
                  donate_argnums=(0,))
    # tb=128 -> grid=(4,): exercises batch tiling / pipelining / megacore split.
    y, s, logdet = fwd(x, prepared, tb=128)
    jax.block_until_ready((y, s, logdet))

    # Check vs. a reference with the same mixed-precision matmul structure.
    assert jnp.allclose(y, y_m, atol=5e-3, rtol=5e-3)
    assert jnp.allclose(s, s_m, atol=5e-3, rtol=5e-3)
    assert jnp.allclose(logdet, ld_m, atol=5e-2, rtol=5e-3)

    # Sanity check vs. the pure-f32 PyTorch-equivalent math (bf16 first-layer
    # MXU inputs introduce small rounding that exp(s) amplifies slightly).
    assert jnp.allclose(y, y_f, atol=5e-2, rtol=5e-2)
    assert jnp.allclose(s, s_f, atol=2e-2, rtol=2e-2)
    assert jnp.allclose(logdet, ld_f, atol=3e-1, rtol=3e-2)

    print("KERNEL_OK")
</pallas_src>

<mosaic_0001>
module attributes {stable_mosaic.version = 11 : i64} {
  func.func @_coupling_kernel(%arg0: i32, %arg1: memref<128x256xf32, #tpu.memory_space<vmem>>, %arg2: memref<128x512xbf16, #tpu.memory_space<vmem>>, %arg3: memref<1x512xf32, #tpu.memory_space<vmem>>, %arg4: memref<256x128xf32, #tpu.memory_space<vmem>>, %arg5: memref<1x128xf32, #tpu.memory_space<vmem>>, %arg6: memref<256x128xbf16, #tpu.memory_space<vmem>>, %arg7: memref<1x128xf32, #tpu.memory_space<vmem>>, %arg8: memref<128x128xf32, #tpu.memory_space<vmem>>, %arg9: memref<128x128xf32, #tpu.memory_space<vmem>>, %arg10: memref<128x1xf32, #tpu.memory_space<vmem>>) attributes {dimension_semantics = [#tpu.dimension_semantics<parallel>], iteration_bounds = array<i64: 4>, scalar_prefetch = 0 : i64, scratch_operands = 0 : i64, tpu.core_type = #tpu.core_type<tc>, window_params = [{transform_indices = @transform_0, window_bounds = array<i64: 128, 256>}, {pipeline_mode = #tpu.pipeline_mode<synchronous>, transform_indices = @transform_1, window_bounds = array<i64: 128, 512>}, {pipeline_mode = #tpu.pipeline_mode<synchronous>, transform_indices = @transform_2, window_bounds = array<i64: 1, 512>}, {pipeline_mode = #tpu.pipeline_mode<synchronous>, transform_indices = @transform_3, window_bounds = array<i64: 256, 128>}, {pipeline_mode = #tpu.pipeline_mode<synchronous>, transform_indices = @transform_4, window_bounds = array<i64: 1, 128>}, {pipeline_mode = #tpu.pipeline_mode<synchronous>, transform_indices = @transform_5, window_bounds = array<i64: 256, 128>}, {pipeline_mode = #tpu.pipeline_mode<synchronous>, transform_indices = @transform_6, window_bounds = array<i64: 1, 128>}, {transform_indices = @transform_7, window_bounds = array<i64: 128, 128>}, {transform_indices = @transform_8, window_bounds = array<i64: 128, 128>}, {transform_indices = @transform_9, window_bounds = array<i64: 128, 1>}]} {
    %c0 = arith.constant 0 : index
    %c0_0 = arith.constant 0 : index
    %0 = vector.load %arg1[%c0, %c0_0] : memref<128x256xf32, #tpu.memory_space<vmem>>, vector<128x128xf32>
    %c0_1 = arith.constant 0 : index
    %c128 = arith.constant 128 : index
    %1 = vector.load %arg1[%c0_1, %c128] : memref<128x256xf32, #tpu.memory_space<vmem>>, vector<128x128xf32>
    %2 = arith.truncf %0 : vector<128x128xf32> to vector<128x128xbf16>
    %c0_2 = arith.constant 0 : index
    %c0_3 = arith.constant 0 : index
    %3 = vector.load %arg2[%c0_2, %c0_3] : memref<128x512xbf16, #tpu.memory_space<vmem>>, vector<128x512xbf16>
    %cst = arith.constant dense<0.000000e+00> : vector<128x512xf32>
    %4 = tpu.matmul %2, %3, %cst {dimension_numbers = #tpu.dot_dimension_numbers<[1], [0], [0], [1], [0, 0, 1, 1], [], []>} : vector<128x128xbf16>, vector<128x512xbf16>, vector<128x512xf32> -> vector<128x512xf32>
    %c0_4 = arith.constant 0 : index
    %c0_5 = arith.constant 0 : index
    %5 = vector.load %arg3[%c0_4, %c0_5] : memref<1x512xf32, #tpu.memory_space<vmem>>, vector<1x512xf32>
    %6 = vector.broadcast %5 : vector<1x512xf32> to vector<128x512xf32>
    %7 = arith.addf %4, %6 : vector<128x512xf32>
    %cst_6 = arith.constant 0.000000e+00 : f32
    %8 = vector.broadcast %cst_6 : f32 to vector<128x512xf32>
    %9 = arith.maximumf %7, %8 : vector<128x512xf32>
    %10 = vector.extract_strided_slice %9 {offsets = [0, 0], sizes = [128, 256], strides = [1, 1]} : vector<128x512xf32> to vector<128x256xf32>
    %c0_7 = arith.constant 0 : index
    %c0_8 = arith.constant 0 : index
    %11 = vector.load %arg4[%c0_7, %c0_8] : memref<256x128xf32, #tpu.memory_space<vmem>>, vector<256x128xf32>
    %cst_9 = arith.constant dense<0.000000e+00> : vector<128x128xf32>
    %12 = tpu.matmul %10, %11, %cst_9 {dimension_numbers = #tpu.dot_dimension_numbers<[1], [0], [0], [1], [0, 0, 1, 1], [], []>} : vector<128x256xf32>, vector<256x128xf32>, vector<128x128xf32> -> vector<128x128xf32>
    %c0_10 = arith.constant 0 : index
    %c0_11 = arith.constant 0 : index
    %13 = vector.load %arg5[%c0_10, %c0_11] : memref<1x128xf32, #tpu.memory_space<vmem>>, vector<1x128xf32>
    %14 = vector.broadcast %13 : vector<1x128xf32> to vector<128x128xf32>
    %15 = arith.addf %12, %14 : vector<128x128xf32>
    %16 = vector.extract_strided_slice %9 {offsets = [0, 256], sizes = [128, 256], strides = [1, 1]} : vector<128x512xf32> to vector<128x256xf32>
    %17 = arith.truncf %16 : vector<128x256xf32> to vector<128x256xbf16>
    %c0_12 = arith.constant 0 : index
    %c0_13 = arith.constant 0 : index
    %18 = vector.load %arg6[%c0_12, %c0_13] : memref<256x128xbf16, #tpu.memory_space<vmem>>, vector<256x128xbf16>
    %cst_14 = arith.constant dense<0.000000e+00> : vector<128x128xf32>
    %19 = tpu.matmul %17, %18, %cst_14 {dimension_numbers = #tpu.dot_dimension_numbers<[1], [0], [0], [1], [0, 0, 1, 1], [], []>} : vector<128x256xbf16>, vector<256x128xbf16>, vector<128x128xf32> -> vector<128x128xf32>
    %c0_15 = arith.constant 0 : index
    %c0_16 = arith.constant 0 : index
    %20 = vector.load %arg7[%c0_15, %c0_16] : memref<1x128xf32, #tpu.memory_space<vmem>>, vector<1x128xf32>
    %21 = vector.broadcast %20 : vector<1x128xf32> to vector<128x128xf32>
    %22 = arith.addf %19, %21 : vector<128x128xf32>
    %23 = math.exp %15 : vector<128x128xf32>
    %24 = arith.mulf %1, %23 : vector<128x128xf32>
    %25 = arith.addf %24, %22 : vector<128x128xf32>
    %c0_17 = arith.constant 0 : index
    %c0_18 = arith.constant 0 : index
    %26 = vector.load %arg8[%c0_17, %c0_18] : memref<128x128xf32, #tpu.memory_space<vmem>>, vector<128x128xf32>
    tpu.vector_store %arg8[%c0_17, %c0_18], %25 {strides = array<i32>} : memref<128x128xf32, #tpu.memory_space<vmem>>, vector<128x128xf32>,
    %c0_19 = arith.constant 0 : index
    %c0_20 = arith.constant 0 : index
    %27 = vector.load %arg9[%c0_19, %c0_20] : memref<128x128xf32, #tpu.memory_space<vmem>>, vector<128x128xf32>
    tpu.vector_store %arg9[%c0_19, %c0_20], %15 {strides = array<i32>} : memref<128x128xf32, #tpu.memory_space<vmem>>, vector<128x128xf32>,
    %cst_21 = arith.constant dense<0.000000e+00> : vector<128xf32>
    %28 = vector.multi_reduction <add>, %15, %cst_21 [1] : vector<128x128xf32> to vector<128xf32>
    %29 = vector.shape_cast %28 : vector<128xf32> to vector<128x1xf32>
    %c0_22 = arith.constant 0 : index
    %c0_23 = arith.constant 0 : index
    %30 = vector.load %arg10[%c0_22, %c0_23] : memref<128x1xf32, #tpu.memory_space<vmem>>, vector<128x1xf32>
    tpu.vector_store %arg10[%c0_22, %c0_23], %29 {strides = array<i32>} : memref<128x1xf32, #tpu.memory_space<vmem>>, vector<128x1xf32>,
    return
  }
  func.func @transform_0(%arg0: i32) -> (i32, i32) {
    %c0_i32 = arith.constant 0 : i32
    %c0_i32_0 = arith.constant 0 : i32
    return %arg0, %c0_i32 : i32, i32
  }
  func.func @transform_1(%arg0: i32) -> (i32, i32) {
    %c0_i32 = arith.constant 0 : i32
    %c0_i32_0 = arith.constant 0 : i32
    %c0_i32_1 = arith.constant 0 : i32
    return %c0_i32, %c0_i32_0 : i32, i32
  }
  func.func @transform_2(%arg0: i32) -> (i32, i32) {
    %c0_i32 = arith.constant 0 : i32
    %c0_i32_0 = arith.constant 0 : i32
    %c0_i32_1 = arith.constant 0 : i32
    return %c0_i32, %c0_i32_0 : i32, i32
  }
  func.func @transform_3(%arg0: i32) -> (i32, i32) {
    %c0_i32 = arith.constant 0 : i32
    %c0_i32_0 = arith.constant 0 : i32
    %c0_i32_1 = arith.constant 0 : i32
    return %c0_i32, %c0_i32_0 : i32, i32
  }
  func.func @transform_4(%arg0: i32) -> (i32, i32) {
    %c0_i32 = arith.constant 0 : i32
    %c0_i32_0 = arith.constant 0 : i32
    %c0_i32_1 = arith.constant 0 : i32
    return %c0_i32, %c0_i32_0 : i32, i32
  }
  func.func @transform_5(%arg0: i32) -> (i32, i32) {
    %c0_i32 = arith.constant 0 : i32
    %c0_i32_0 = arith.constant 0 : i32
    %c0_i32_1 = arith.constant 0 : i32
    return %c0_i32, %c0_i32_0 : i32, i32
  }
  func.func @transform_6(%arg0: i32) -> (i32, i32) {
    %c0_i32 = arith.constant 0 : i32
    %c0_i32_0 = arith.constant 0 : i32
    %c0_i32_1 = arith.constant 0 : i32
    return %c0_i32, %c0_i32_0 : i32, i32
  }
  func.func @transform_7(%arg0: i32) -> (i32, i32) {
    %c1_i32 = arith.constant 1 : i32
    %c0_i32 = arith.constant 0 : i32
    return %arg0, %c1_i32 : i32, i32
  }
  func.func @transform_8(%arg0: i32) -> (i32, i32) {
    %c0_i32 = arith.constant 0 : i32
    %c0_i32_0 = arith.constant 0 : i32
    return %arg0, %c0_i32 : i32, i32
  }
  func.func @transform_9(%arg0: i32) -> (i32, i32) {
    %c0_i32 = arith.constant 0 : i32
    %c0_i32_0 = arith.constant 0 : i32
    return %arg0, %c0_i32 : i32, i32
  }
}

</mosaic_0001>

<llo_original>
// kernel: affine_coupling_forward.1
$region0: #{affine_coupling_forward.1}
  #allocation0 [shape = 'u32[]', space=smem, size = 0x4, offset = 0x4, fixed_abs, tag = 'smem constant byte address 0x4 - core index']
  #allocation1 [shape = 'u32[144,128]{1,0:T(1,128)}', space=vmem, size = 0x12000, scoped, tag = 'internal scratch']
  %s0 = inlined_call_operand.hbm [shape: f32[512,256], index: 0, kind: input, shape index: {}, may-alias: {0,7}]
  %s1 = inlined_call_operand.hbm [shape: bf16[128,512], index: 1, kind: input, shape index: {}]
  %s2 = inlined_call_operand.hbm [shape: f32[1,512], index: 2, kind: input, shape index: {}]
  %s3 = inlined_call_operand.hbm [shape: f32[256,128], index: 3, kind: input, shape index: {}]
  %s4 = inlined_call_operand.vmem [shape: f32[1,128], index: 4, kind: input, shape index: {}]
  %s5 = inlined_call_operand.hbm [shape: bf16[256,128], index: 5, kind: input, shape index: {}]
  %s6 = inlined_call_operand.vmem [shape: f32[1,128], index: 6, kind: input, shape index: {}]
  %s7 = inlined_call_operand.hbm [shape: f32[512,256], index: 7, kind: output, shape index: {0}, may-alias: {0,7}]
  %s8 = inlined_call_operand.hbm [shape: f32[512,128], index: 8, kind: output, shape index: {1}]
  %s9 = inlined_call_operand.vmem [shape: f32[512,1], index: 9, kind: output, shape index: {2}]
  %10 = xla_tuple %s7, %s8, %s9
  %s11 = sld [smem:[#allocation0]]
  $region97: #{affine_coupling_forward.1} parent=0
    _
  %s13 = ssub.s32 1, %s11
  %s14 = scalar_select 0, %s13, %s11
  $region1: #{affine_coupling_forward.1} parent=0
    #allocation2 [shape = 'u8[262144]{0}', space=vmem, size = 0x40000, scoped, tag = 'input window, operand 0']
    #allocation3 [shape = 's32[2]{0}', space=sflag, size = 0x8, scoped, tag = 'scoped memory for affine_coupling_forward.1']
    #allocation4 [shape = 's32[2]{0}', space=sflag, size = 0x8, scoped, tag = 'scoped memory for affine_coupling_forward.1']
    #allocation5 [shape = 'u8[131072]{0}', space=vmem, size = 0x20000, scoped, tag = 'input window, operand 1, single buffered']
    #allocation6 [shape = 's32[1]{0}', space=sflag, size = 0x4, scoped, tag = 'scoped memory for affine_coupling_forward.1']
    #allocation7 [shape = 'u8[2048]{0}', space=vmem, size = 0x800, scoped, tag = 'input window, operand 2, single buffered']
    #allocation8 [shape = 'u8[131072]{0}', space=vmem, size = 0x20000, scoped, tag = 'input window, operand 3, single buffered']
    #allocation9 [shape = 's32[1]{0}', space=sflag, size = 0x4, scoped, tag = 'scoped memory for affine_coupling_forward.1']
    #allocation10 [shape = 'u8[65536]{0}', space=vmem, size = 0x10000, scoped, tag = 'input window, operand 5, single buffered']
    #allocation11 [shape = 'u8[131072]{0}', space=vmem, size = 0x20000, scoped, tag = 'output window, operand 0']
    #allocation12 [shape = 'u8[131072]{0}', space=vmem, size = 0x20000, scoped, tag = 'output window, operand 1']
    #allocation13 [shape = 's32[2]{0}', space=sflag, size = 0x8, scoped, tag = 'scoped memory for affine_coupling_forward.1']
    %15 = vsyncpa [#allocation3], 0
    %s16 = scalar_lea.sflag [#allocation3], 1
    %17 = vsyncpa %s16, 0
    %18 = vsyncpa [#allocation6], 0
    %19 = vsyncpa [#allocation9], 0
    %20 = vsyncpa [#allocation4], 0
    %s21 = scalar_lea.sflag [#allocation4], 1
    %22 = vsyncpa %s21, 0
    %23 = vsyncpa [#allocation13], 0
    %s24 = scalar_lea.sflag [#allocation13], 1
    %25 = vsyncpa %s24, 0
    loop: start=0, step=1, limit=6
    $region2: #{affine_coupling_forward.1} parent=1 // loop_pre_header
      _
    $region3: #{affine_coupling_forward.1} parent=1 // loop_header
      %s27 = sphi 0, %s31
      %p28 = scmp.ge.s32.totalorder %s27, 6
      %s37 = sphi 0, %s39
      %s40 = sphi 0, %s37
      %s41 = sphi 0, %s40
      %s57 = sphi 0, %s41
      %s61 = sphi 0, %s61
      %s63 = sphi 0, %s61
      %s64 = sphi 0, %s63
      %s78 = sphi 0, %s64
      %s82 = sphi 0, %s82
      %s84 = sphi 0, %s82
      %s85 = sphi 0, %s84
      %s99 = sphi 0, %s85
      %s103 = sphi 0, %s103
      %s105 = sphi 0, %s103
      %s106 = sphi 0, %s105
      %s120 = sphi 0, %s106
      %s124 = sphi 0, %s124
      %s126 = sphi 0, %s124
      %s127 = sphi 0, %s126
      %s141 = sphi 0, %s127
      %s145 = sphi 0, %s145
      %s147 = sphi 0, %s145
      %s148 = sphi 0, %s147
      %s162 = sphi 0, %s148
      %s166 = sphi 0, %s166
      %s168 = sphi 0, %s166
      %s169 = sphi 0, %s168
      %s183 = sphi 0, %s169
      %s189 = sphi 0, %s191
      %s192 = sphi 0, %s189
      %s193 = sphi 0, %s192
      %s209 = sphi 0, %s193
      %s215 = sphi 0, %s217
      %s218 = sphi 0, %s215
      %s219 = sphi 0, %s218
      %s235 = sphi 0, %s219
      %s241 = sphi 0, %s243
      %s244 = sphi 0, %s241
      %s245 = sphi 0, %s244
      %s261 = sphi 0, %s245
    $region4: #{affine_coupling_forward.1} parent=1 // loop_header_branch
      %30 = sbr.rel (%p28) target = $region8
    $region5: #{affine_coupling_forward.1} parent=1 // loop_body
      %s32 = ssub.s32 %s27, 1
      %s33 = ssub.s32 %s27, 2
      %s34 = sadd.s32 %s27, 1
      %s35 = ssub.s32 %s27, %s34
      %p36 = scmp.eq.s32.totalorder %s35, 0
      %s38 = sadd.s32 %s37, 1
      %s39 = scalar_select %p36, %s37, %s38
      %p42 = pneg %p36
      %p43 = scmp.eq.s32.totalorder %s27, 3
      %p44 = por %p42, %p43
      %p45 = scmp.ne.s32.totalorder %s37, %s40
      %p46 = scmp.eq.s32.totalorder %s27, 0
      %p47 = por %p45, %p46
      %p48 = scmp.ne.s32.totalorder %s37, %s40
      %p49 = scmp.eq.s32.totalorder %s32, 3
      %p50 = por %p48, %p49
      %p51 = scmp.ne.s32.totalorder %s40, %s41
      %p52 = scmp.eq.s32.totalorder %s32, 0
      %p53 = por %p51, %p52
      %p54 = scmp.ne.s32.totalorder %s40, %s41
      %p55 = scmp.eq.s32.totalorder %s33, 3
      %p56 = por %p54, %p55
      %p58 = scmp.ne.s32.totalorder %s41, %s57
      %p59 = scmp.eq.s32.totalorder %s33, 0
      %p60 = por %p58, %p59
      %s62 = sadd.s32 %s61, 1
      %p65 = scmp.eq.s32.totalorder %s27, 3
      %p66 = scmp.ne.s32.totalorder %s61, %s63
      %p67 = scmp.eq.s32.totalorder %s27, 0
      %p68 = por %p66, %p67
      %p69 = scmp.ne.s32.totalorder %s61, %s63
      %p70 = scmp.eq.s32.totalorder %s32, 3
      %p71 = por %p69, %p70
      %p72 = scmp.ne.s32.totalorder %s63, %s64
      %p73 = scmp.eq.s32.totalorder %s32, 0
      %p74 = por %p72, %p73
      %p75 = scmp.ne.s32.totalorder %s63, %s64
      %p76 = scmp.eq.s32.totalorder %s33, 3
      %p77 = por %p75, %p76
      %p79 = scmp.ne.s32.totalorder %s64, %s78
      %p80 = scmp.eq.s32.totalorder %s33, 0
      %p81 = por %p79, %p80
      %s83 = sadd.s32 %s82, 1
      %p86 = scmp.eq.s32.totalorder %s27, 3
      %p87 = scmp.ne.s32.totalorder %s82, %s84
      %p88 = scmp.eq.s32.totalorder %s27, 0
      %p89 = por %p87, %p88
      %p90 = scmp.ne.s32.totalorder %s82, %s84
      %p91 = scmp.eq.s32.totalorder %s32, 3
      %p92 = por %p90, %p91
      %p93 = scmp.ne.s32.totalorder %s84, %s85
      %p94 = scmp.eq.s32.totalorder %s32, 0
      %p95 = por %p93, %p94
      %p96 = scmp.ne.s32.totalorder %s84, %s85
      %p97 = scmp.eq.s32.totalorder %s33, 3
      %p98 = por %p96, %p97
      %p100 = scmp.ne.s32.totalorder %s85, %s99
      %p101 = scmp.eq.s32.totalorder %s33, 0
      %p102 = por %p100, %p101
      %s104 = sadd.s32 %s103, 1
      %p107 = scmp.eq.s32.totalorder %s27, 3
      %p108 = scmp.ne.s32.totalorder %s103, %s105
      %p109 = scmp.eq.s32.totalorder %s27, 0
      %p110 = por %p108, %p109
      %p111 = scmp.ne.s32.totalorder %s103, %s105
      %p112 = scmp.eq.s32.totalorder %s32, 3
      %p113 = por %p111, %p112
      %p114 = scmp.ne.s32.totalorder %s105, %s106
      %p115 = scmp.eq.s32.totalorder %s32, 0
      %p116 = por %p114, %p115
      %p117 = scmp.ne.s32.totalorder %s105, %s106
      %p118 = scmp.eq.s32.totalorder %s33, 3
      %p119 = por %p117, %p118
      %p121 = scmp.ne.s32.totalorder %s106, %s120
      %p122 = scmp.eq.s32.totalorder %s33, 0
      %p123 = por %p121, %p122
      %s125 = sadd.s32 %s124, 1
      %p128 = scmp.eq.s32.totalorder %s27, 3
      %p129 = scmp.ne.s32.totalorder %s124, %s126
      %p130 = scmp.eq.s32.totalorder %s27, 0
      %p131 = por %p129, %p130
      %p132 = scmp.ne.s32.totalorder %s124, %s126
      %p133 = scmp.eq.s32.totalorder %s32, 3
      %p134 = por %p132, %p133
      %p135 = scmp.ne.s32.totalorder %s126, %s127
      %p136 = scmp.eq.s32.totalorder %s32, 0
      %p137 = por %p135, %p136
      %p138 = scmp.ne.s32.totalorder %s126, %s127
      %p139 = scmp.eq.s32.totalorder %s33, 3
      %p140 = por %p138, %p139
      %p142 = scmp.ne.s32.totalorder %s127, %s141
      %p143 = scmp.eq.s32.totalorder %s33, 0
      %p144 = por %p142, %p143
      %s146 = sadd.s32 %s145, 1
      %p149 = scmp.eq.s32.totalorder %s27, 3
      %p150 = scmp.ne.s32.totalorder %s145, %s147
      %p151 = scmp.eq.s32.totalorder %s27, 0
      %p152 = por %p150, %p151
      %p153 = scmp.ne.s32.totalorder %s145, %s147
      %p154 = scmp.eq.s32.totalorder %s32, 3
      %p155 = por %p153, %p154
      %p156 = scmp.ne.s32.totalorder %s147, %s148
      %p157 = scmp.eq.s32.totalorder %s32, 0
      %p158 = por %p156, %p157
      %p159 = scmp.ne.s32.totalorder %s147, %s148
      %p160 = scmp.eq.s32.totalorder %s33, 3
      %p161 = por %p159, %p160
      %p163 = scmp.ne.s32.totalorder %s148, %s162
      %p164 = scmp.eq.s32.totalorder %s33, 0
      %p165 = por %p163, %p164
      %s167 = sadd.s32 %s166, 1
      %p170 = scmp.eq.s32.totalorder %s27, 3
      %p171 = scmp.ne.s32.totalorder %s166, %s168
      %p172 = scmp.eq.s32.totalorder %s27, 0
      %p173 = por %p171, %p172
      %p174 = scmp.ne.s32.totalorder %s166, %s168
      %p175 = scmp.eq.s32.totalorder %s32, 3
      %p176 = por %p174, %p175
      %p177 = scmp.ne.s32.totalorder %s168, %s169
      %p178 = scmp.eq.s32.totalorder %s32, 0
      %p179 = por %p177, %p178
      %p180 = scmp.ne.s32.totalorder %s168, %s169
      %p181 = scmp.eq.s32.totalorder %s33, 3
      %p182 = por %p180, %p181
      %p184 = scmp.ne.s32.totalorder %s169, %s183
      %p185 = scmp.eq.s32.totalorder %s33, 0
      %p186 = por %p184, %p185
      %s187 = ssub.s32 %s27, %s34
      %p188 = scmp.eq.s32.totalorder %s187, 0
      %s190 = sadd.s32 %s189, 1
      %s191 = scalar_select %p188, %s189, %s190
      %p194 = pneg %p188
      %p195 = scmp.eq.s32.totalorder %s27, 3
      %p196 = por %p194, %p195
      %p197 = scmp.ne.s32.totalorder %s189, %s192
      %p198 = scmp.eq.s32.totalorder %s27, 0
      %p199 = por %p197, %p198
      %p200 = scmp.ne.s32.totalorder %s189, %s192
      %p201 = scmp.eq.s32.totalorder %s32, 3
      %p202 = por %p200, %p201
      %p203 = scmp.ne.s32.totalorder %s192, %s193
      %p204 = scmp.eq.s32.totalorder %s32, 0
      %p205 = por %p203, %p204
      %p206 = scmp.ne.s32.totalorder %s192, %s193
      %p207 = scmp.eq.s32.totalorder %s33, 3
      %p208 = por %p206, %p207
      %p210 = scmp.ne.s32.totalorder %s193, %s209
      %p211 = scmp.eq.s32.totalorder %s33, 0
      %p212 = por %p210, %p211
      %s213 = ssub.s32 %s27, %s34
      %p214 = scmp.eq.s32.totalorder %s213, 0
      %s216 = sadd.s32 %s215, 1
      %s217 = scalar_select %p214, %s215, %s216
      %p220 = pneg %p214
      %p221 = scmp.eq.s32.totalorder %s27, 3
      %p222 = por %p220, %p221
      %p223 = scmp.ne.s32.totalorder %s215, %s218
      %p224 = scmp.eq.s32.totalorder %s27, 0
      %p225 = por %p223, %p224
      %p226 = scmp.ne.s32.totalorder %s215, %s218
      %p227 = scmp.eq.s32.totalorder %s32, 3
      %p228 = por %p226, %p227
      %p229 = scmp.ne.s32.totalorder %s218, %s219
      %p230 = scmp.eq.s32.totalorder %s32, 0
      %p231 = por %p229, %p230
      %p232 = scmp.ne.s32.totalorder %s218, %s219
      %p233 = scmp.eq.s32.totalorder %s33, 3
      %p234 = por %p232, %p233
      %p236 = scmp.ne.s32.totalorder %s219, %s235
      %p237 = scmp.eq.s32.totalorder %s33, 0
      %p238 = por %p236, %p237
      %s239 = ssub.s32 %s27, %s34
      %p240 = scmp.eq.s32.totalorder %s239, 0
      %s242 = sadd.s32 %s241, 1
      %s243 = scalar_select %p240, %s241, %s242
      %p246 = pneg %p240
      %p247 = scmp.eq.s32.totalorder %s27, 3
      %p248 = por %p246, %p247
      %p249 = scmp.ne.s32.totalorder %s241, %s244
      %p250 = scmp.eq.s32.totalorder %s27, 0
      %p251 = por %p249, %p250
      %p252 = scmp.ne.s32.totalorder %s241, %s244
      %p253 = scmp.eq.s32.totalorder %s32, 3
      %p254 = por %p252, %p253
      %p255 = scmp.ne.s32.totalorder %s244, %s245
      %p256 = scmp.eq.s32.totalorder %s32, 0
      %p257 = por %p255, %p256
      %p258 = scmp.ne.s32.totalorder %s244, %s245
      %p259 = scmp.eq.s32.totalorder %s33, 3
      %p260 = por %p258, %p259
      %p262 = scmp.ne.s32.totalorder %s245, %s261
      %p263 = scmp.eq.s32.totalorder %s33, 0
      %p264 = por %p262, %p263
      %p265 = scmp.le.s32.totalorder 1, %s27
      %p266 = scmp.lt.s32.totalorder %s27, 5
      %p267 = pnand %p265, %p266
      %p268 = pneg %p267
      // Predicated region
      $region9: #{affine_coupling_forward.1} parent=5 // pred_check
        _
      $region10: #{affine_coupling_forward.1} parent=5 // pred_check_branch
        %270 = sbr.rel (%p267) target = $region12
      $region11: #{affine_coupling_forward.1} parent=5 // pred_region
        %s271 = ssub.s32 %s27, 1
        // Predicated region
        $region13: #{affine_coupling_forward.1} parent=11 // pred_check
          %p272 = pneg %p74
        $region14: #{affine_coupling_forward.1} parent=11 // pred_check_branch
          %274 = sbr.rel (%p272) target = $region16
        $region15: #{affine_coupling_forward.1} parent=11 // pred_region
          %s276 = ssub.s32 4096, 4096
          %277 = vsyncadd [#allocation6], %s276
          %s278 = sshll.u32 [#allocation5], 4
          %s279 = int_to_ptr.vmem [resolvable:$true] %s278
          %284 = dma.hbm_to_vmem [thread:$0]  %s1, 4096, %s279, [#allocation6], 256, 256, 16
        $region16: #{affine_coupling_forward.1} parent=11 // pred_fallthru
          _
        // Predicated region
        $region17: #{affine_coupling_forward.1} parent=11 // pred_check
          %p285 = pneg %p95
        $region18: #{affine_coupling_forward.1} parent=11 // pred_check_branch
          %287 = sbr.rel (%p285) target = $region20
        $region19: #{affine_coupling_forward.1} parent=11 // pred_region
          %s289 = ssub.s32 64, 64
          %290 = vsyncadd [#allocation6], %s289
          %s292 = sshll.u32 [#allocation7], 4
          %s293 = int_to_ptr.vmem [resolvable:$true] %s292
          %295 = dma.hbm_to_vmem [thread:$0]  %s2, 64, %s293, [#allocation6]
        $region20: #{affine_coupling_forward.1} parent=11 // pred_fallthru
          _
        // Predicated region
        $region21: #{affine_coupling_forward.1} parent=11 // pred_check
          %p296 = pneg %p116
        $region22: #{affine_coupling_forward.1} parent=11 // pred_check_branch
          %298 = sbr.rel (%p296) target = $region24
        $region23: #{affine_coupling_forward.1} parent=11 // pred_region
          %s300 = ssub.s32 4096, 4096
          %301 = vsyncadd [#allocation9], %s300
          %s302 = sshll.u32 [#allocation8], 4
          %s303 = int_to_ptr.vmem [resolvable:$true] %s302
          %308 = dma.hbm_to_vmem [thread:$0]  %s3, 4096, %s303, [#allocation9], 128, 128, 8
        $region24: #{affine_coupling_forward.1} parent=11 // pred_fallthru
          _
        // Predicated region
        $region25: #{affine_coupling_forward.1} parent=11 // pred_check
          %p309 = pneg %p137
        $region26: #{affine_coupling_forward.1} parent=11 // pred_check_branch
          %311 = sbr.rel (%p309) target = $region28
        $region27: #{affine_coupling_forward.1} parent=11 // pred_region
          _
        $region28: #{affine_coupling_forward.1} parent=11 // pred_fallthru
          _
        // Predicated region
        $region29: #{affine_coupling_forward.1} parent=11 // pred_check
          %p312 = pneg %p158
        $region30: #{affine_coupling_forward.1} parent=11 // pred_check_branch
          %314 = sbr.rel (%p312) target = $region32
        $region31: #{affine_coupling_forward.1} parent=11 // pred_region
          %s316 = ssub.s32 2048, 2048
          %317 = vsyncadd [#allocation9], %s316
          %s318 = sshll.u32 [#allocation10], 4
          %s319 = int_to_ptr.vmem [resolvable:$true] %s318
          %324 = dma.hbm_to_vmem [thread:$0]  %s5, 2048, %s319, [#allocation9], 64, 64, 4
        $region32: #{affine_coupling_forward.1} parent=11 // pred_fallthru
          _
        // Predicated region
        $region33: #{affine_coupling_forward.1} parent=11 // pred_check
          %p325 = pneg %p179
        $region34: #{affine_coupling_forward.1} parent=11 // pred_check_branch
          %327 = sbr.rel (%p325) target = $region36
        $region35: #{affine_coupling_forward.1} parent=11 // pred_region
          _
        $region36: #{affine_coupling_forward.1} parent=11 // pred_fallthru
          _
      $region12: #{affine_coupling_forward.1} parent=5 // pred_fallthru
        _
      %p328 = scmp.lt.s32.totalorder %s27, 4
      // Predicated region
      $region37: #{affine_coupling_forward.1} parent=5 // pred_check
        %p329 = pneg %p328
      $region38: #{affine_coupling_forward.1} parent=5 // pred_check_branch
        %331 = sbr.rel (%p329) target = $region40
      $region39: #{affine_coupling_forward.1} parent=5 // pred_region
        // Predicated region
        $region41: #{affine_coupling_forward.1} parent=39 // pred_check
          %p332 = pneg %p47
        $region42: #{affine_coupling_forward.1} parent=39 // pred_check_branch
          %334 = sbr.rel (%p332) target = $region44
        $region43: #{affine_coupling_forward.1} parent=39 // pred_region
          %s335 = sand.u32 %s37, 1
          %s336 = scalar_lea.sflag [#allocation3], %s335
          %s337 = sand.u32 %s37, 1
          %s338 = smul.addr %s337, 256
          %s339 = scalar_lea.vmem [#allocation2], %s338
          %s340 = smul.u32 16, %s27
          %s342 = ssub.s32 4096, 4096
          %343 = vsyncadd %s336, %s342
          %s344 = smul.addr %s340, 2
          %s345 = smul.addr %s344, 128
          %s346 = scalar_lea.hbm %s0, %s345
          %s347 = sshll.u32 %s339, 4
          %s348 = int_to_ptr.vmem [resolvable:$true] %s347
          %353 = dma.hbm_to_vmem [thread:$0]  %s346, 4096, %s348, %s336, 256, 256, 16
        $region44: #{affine_coupling_forward.1} parent=39 // pred_fallthru
          _
      $region40: #{affine_coupling_forward.1} parent=5 // pred_fallthru
        _
      %p354 = scmp.le.s32.totalorder 1, %s27
      %p355 = scmp.lt.s32.totalorder %s27, 5
      %p356 = pnand %p354, %p355
      %p357 = pneg %p356
      // Predicated region
      $region45: #{affine_coupling_forward.1} parent=5 // pred_check
        _
      $region46: #{affine_coupling_forward.1} parent=5 // pred_check_branch
        %359 = sbr.rel (%p356) target = $region48
      $region47: #{affine_coupling_forward.1} parent=5 // pred_region
        %s360 = ssub.s32 %s27, 1
        %s361 = sand.u32 %s40, 1
        %s362 = scalar_lea.sflag [#allocation3], %s361
        %s363 = sand.u32 %s40, 1
        %s364 = smul.addr %s363, 256
        %s365 = scalar_lea.vmem [#allocation2], %s364
        // Predicated region
        $region49: #{affine_coupling_forward.1} parent=47 // pred_check
          %p366 = pneg %p53
        $region50: #{affine_coupling_forward.1} parent=47 // pred_check_branch
          %368 = sbr.rel (%p366) target = $region52
        $region51: #{affine_coupling_forward.1} parent=47 // pred_region
          %369 = dma.done %s362, 4096
        $region52: #{affine_coupling_forward.1} parent=47 // pred_fallthru
          _
        // Predicated region
        $region53: #{affine_coupling_forward.1} parent=47 // pred_check
          %p370 = pneg %p74
        $region54: #{affine_coupling_forward.1} parent=47 // pred_check_branch
          %372 = sbr.rel (%p370) target = $region56
        $region55: #{affine_coupling_forward.1} parent=47 // pred_region
          %373 = dma.done [#allocation6], 4096
        $region56: #{affine_coupling_forward.1} parent=47 // pred_fallthru
          _
        // Predicated region
        $region57: #{affine_coupling_forward.1} parent=47 // pred_check
          %p374 = pneg %p95
        $region58: #{affine_coupling_forward.1} parent=47 // pred_check_branch
          %376 = sbr.rel (%p374) target = $region60
        $region59: #{affine_coupling_forward.1} parent=47 // pred_region
          %377 = dma.done [#allocation6], 64
        $region60: #{affine_coupling_forward.1} parent=47 // pred_fallthru
          _
        // Predicated region
        $region61: #{affine_coupling_forward.1} parent=47 // pred_check
          %p378 = pneg %p116
        $region62: #{affine_coupling_forward.1} parent=47 // pred_check_branch
          %380 = sbr.rel (%p378) target = $region64
        $region63: #{affine_coupling_forward.1} parent=47 // pred_region
          %381 = dma.done [#allocation9], 4096
        $region64: #{affine_coupling_forward.1} parent=47 // pred_fallthru
          _
        // Predicated region
        $region65: #{affine_coupling_forward.1} parent=47 // pred_check
          %p382 = pneg %p158
        $region66: #{affine_coupling_forward.1} parent=47 // pred_check_branch
          %384 = sbr.rel (%p382) target = $region68
        $region67: #{affine_coupling_forward.1} parent=47 // pred_region
          %385 = dma.done [#allocation9], 2048
        $region68: #{affine_coupling_forward.1} parent=47 // pred_fallthru
          _
        %s386 = sand.u32 %s40, 1
        %s387 = scalar_lea.sflag [#allocation3], %s386
        %s388 = sand.u32 %s40, 1
        %s389 = smul.addr %s388, 256
        %s390 = scalar_lea.vmem [#allocation2], %s389
        %p391 = pneg %p53
        %p392 = pneg %p50
        %p393 = pneg %p74
        %p394 = pneg %p71
        %p395 = pneg %p95
        %p396 = pneg %p92
        %p397 = pneg %p116
        %p398 = pneg %p113
        %p399 = pneg %p137
        %p400 = pneg %p134
        %p401 = pneg %p158
        %p402 = pneg %p155
        %p403 = pneg %p179
        %p404 = pneg %p176
        %p405 = pneg %p205
        %p406 = pneg %p202
        %s407 = sand.u32 %s192, 1
        %s408 = scalar_lea.sflag [#allocation4], %s407
        %s409 = sand.u32 %s192, 1
        %s410 = smul.addr %s409, 128
        %s411 = scalar_lea.vmem [#allocation11], %s410
        %p412 = pneg %p231
        %p413 = pneg %p228
        %s414 = sand.u32 %s218, 1
        %s415 = scalar_lea.sflag [#allocation13], %s414
        %s416 = sand.u32 %s218, 1
        %s417 = smul.addr %s416, 128
        %s418 = scalar_lea.vmem [#allocation12], %s417
        %p419 = pneg %p257
        %p420 = pneg %p254
        %s421 = smul.u32 16, %s32
        %p422 = scmp.lt.s32.totalorder %s421, 63
        %s423 = scalar_select %p422, %s421, 63
        %s424 = smul.addr %s423, 8
        %s425 = scalar_lea.vmem %s9, %s424
        %s426 = smul.u32 16, %s32
        %s427 = smul.u32 16, %s32
        %s428 = smul.u32 16, %s32
        %s429 = smul.u32 16, %s32
        %p430 = scmp.lt.s32.totalorder %s429, 63
        %s431 = scalar_select %p430, %s429, 63
        %s432 = smul.addr %s431, 8
        %s433 = scalar_lea.vmem %s9, %s432
        %s434 = smul.u32 16, %s32
        %v436 = vld [vmem:[%s365] sm:$0xff]
        %v437 = vld [vmem:[%s365 + $0x10] sm:$0xff]
        %v438 = vld [vmem:[%s365 + $0x20] sm:$0xff]
        %v439 = vld [vmem:[%s365 + $0x30] sm:$0xff]
        %v440 = vld [vmem:[%s365 + $0x40] sm:$0xff]
        %v441 = vld [vmem:[%s365 + $0x50] sm:$0xff]
        %v442 = vld [vmem:[%s365 + $0x60] sm:$0xff]
        %v443 = vld [vmem:[%s365 + $0x70] sm:$0xff]
        %v444 = vld [vmem:[%s365 + $0x80] sm:$0xff]
        %v445 = vld [vmem:[%s365 + $0x90] sm:$0xff]
        %v446 = vld [vmem:[%s365 + $0xa0] sm:$0xff]
        %v447 = vld [vmem:[%s365 + $0xb0] sm:$0xff]
        %v448 = vld [vmem:[%s365 + $0xc0] sm:$0xff]
        %v449 = vld [vmem:[%s365 + $0xd0] sm:$0xff]
        %v450 = vld [vmem:[%s365 + $0xe0] sm:$0xff]
        %v451 = vld [vmem:[%s365 + $0xf0] sm:$0xff]
        %v452 = vld [vmem:[%s365 + $0x8] sm:$0xff]
        %v453 = vld [vmem:[%s365 + $0x18] sm:$0xff]
        %v454 = vld [vmem:[%s365 + $0x28] sm:$0xff]
        %v455 = vld [vmem:[%s365 + $0x38] sm:$0xff]
        %v456 = vld [vmem:[%s365 + $0x48] sm:$0xff]
        %v457 = vld [vmem:[%s365 + $0x58] sm:$0xff]
        %v458 = vld [vmem:[%s365 + $0x68] sm:$0xff]
        %v459 = vld [vmem:[%s365 + $0x78] sm:$0xff]
        %v460 = vld [vmem:[%s365 + $0x88] sm:$0xff]
        %v461 = vld [vmem:[%s365 + $0x98] sm:$0xff]
        %v462 = vld [vmem:[%s365 + $0xa8] sm:$0xff]
        %v463 = vld [vmem:[%s365 + $0xb8] sm:$0xff]
        %v464 = vld [vmem:[%s365 + $0xc8] sm:$0xff]
        %v465 = vld [vmem:[%s365 + $0xd8] sm:$0xff]
        %v466 = vld [vmem:[%s365 + $0xe8] sm:$0xff]
        %v467 = vld [vmem:[%s365 + $0xf8] sm:$0xff]
        %v468 = vpack.c.bf16 %v437, %v436
        %v469 = vpack.c.bf16 %v439, %v438
        %v470 = vpack.c.bf16 %v441, %v440
        %v471 = vpack.c.bf16 %v443, %v442
        %v472 = vpack.c.bf16 %v445, %v444
        %v473 = vpack.c.bf16 %v447, %v446
        %v474 = vpack.c.bf16 %v449, %v448
        %v475 = vpack.c.bf16 %v451, %v450
        %v476 = vld [vmem:[#allocation5] sm:$0xff]
        %v477 = vld [vmem:[#allocation5 + $0x8] sm:$0xff]
        %v478 = vld [vmem:[#allocation5 + $0x10] sm:$0xff]
        %v479 = vld [vmem:[#allocation5 + $0x18] sm:$0xff]
        %v480 = vld [vmem:[#allocation5 + $0x20] sm:$0xff]
        %v481 = vld [vmem:[#allocation5 + $0x28] sm:$0xff]
        %v482 = vld [vmem:[#allocation5 + $0x30] sm:$0xff]
        %v483 = vld [vmem:[#allocation5 + $0x38] sm:$0xff]
        %v484 = vld [vmem:[#allocation5 + $0x40] sm:$0xff]
        %v485 = vld [vmem:[#allocation5 + $0x48] sm:$0xff]
        %v486 = vld [vmem:[#allocation5 + $0x50] sm:$0xff]
        %v487 = vld [vmem:[#allocation5 + $0x58] sm:$0xff]
        %v488 = vld [vmem:[#allocation5 + $0x60] sm:$0xff]
        %v489 = vld [vmem:[#allocation5 + $0x68] sm:$0xff]
        %v490 = vld [vmem:[#allocation5 + $0x70] sm:$0xff]
        %v491 = vld [vmem:[#allocation5 + $0x78] sm:$0xff]
        %v492 = vld [vmem:[#allocation5 + $0x80] sm:$0xff]
        %v493 = vld [vmem:[#allocation5 + $0x88] sm:$0xff]
        %v494 = vld [vmem:[#allocation5 + $0x90] sm:$0xff]
        %v495 = vld [vmem:[#allocation5 + $0x98] sm:$0xff]
        %v496 = vld [vmem:[#allocation5 + $0xa0] sm:$0xff]
        %v497 = vld [vmem:[#allocation5 + $0xa8] sm:$0xff]
        %v498 = vld [vmem:[#allocation5 + $0xb0] sm:$0xff]
        %v499 = vld [vmem:[#allocation5 + $0xb8] sm:$0xff]
        %v500 = vld [vmem:[#allocation5 + $0xc0] sm:$0xff]
        %v501 = vld [vmem:[#allocation5 + $0xc8] sm:$0xff]
        %v502 = vld [vmem:[#allocation5 + $0xd0] sm:$0xff]
        %v503 = vld [vmem:[#allocation5 + $0xd8] sm:$0xff]
        %v504 = vld [vmem:[#allocation5 + $0xe0] sm:$0xff]
        %v505 = vld [vmem:[#allocation5 + $0xe8] sm:$0xff]
        %v506 = vld [vmem:[#allocation5 + $0xf0] sm:$0xff]
        %v507 = vld [vmem:[#allocation5 + $0xf8] sm:$0xff]
        %v508 = vld [vmem:[#allocation7] sm:$0xf]
        %v510 = vlaneseq
        %v511 = vshrl.u32 %v510, 7
        %v512 = vsub.s32 0, %v511
        %v513 = vrot.slane %v508, %v512
        %v514 = vlaneseq
        %v515 = vshrl.u32 %v514, 7
        %v516 = vsub.s32 1, %v515
        %v517 = vrot.slane %v508, %v516
        %v518 = vlaneseq
        %v519 = vshrl.u32 %v518, 7
        %v520 = vsub.s32 2, %v519
        %v521 = vrot.slane %v508, %v520
        %v522 = vlaneseq
        %v523 = vshrl.u32 %v522, 7
        %v524 = vsub.s32 3, %v523
        %v525 = vrot.slane %v508, %v524
        %v562 = vunpack.c.l.b16 %v476
        %v563 = vunpack.c.h.b16 %v476
        %v564 = vunpack.c.l.b16 %v477
        %v565 = vunpack.c.h.b16 %v477
        %v566 = vunpack.c.l.b16 %v478
        %v567 = vunpack.c.h.b16 %v478
        %v568 = vunpack.c.l.b16 %v479
        %v569 = vunpack.c.h.b16 %v479
        %v570 = vunpack.c.l.b16 %v480
        %v571 = vunpack.c.h.b16 %v480
        %v572 = vunpack.c.l.b16 %v481
        %v573 = vunpack.c.h.b16 %v481
        %v574 = vunpack.c.l.b16 %v482
        %v575 = vunpack.c.h.b16 %v482
        %v576 = vunpack.c.l.b16 %v483
        %v577 = vunpack.c.h.b16 %v483
        %v578 = vunpack.c.l.b16 %v484
        %v579 = vunpack.c.h.b16 %v484
        %v580 = vunpack.c.l.b16 %v485
        %v581 = vunpack.c.h.b16 %v485
        %v582 = vunpack.c.l.b16 %v486
        %v583 = vunpack.c.h.b16 %v486
        %v584 = vunpack.c.l.b16 %v487
        %v585 = vunpack.c.h.b16 %v487
        %v586 = vunpack.c.l.b16 %v488
        %v587 = vunpack.c.h.b16 %v488
        %v588 = vunpack.c.l.b16 %v489
        %v589 = vunpack.c.h.b16 %v489
        %v590 = vunpack.c.l.b16 %v490
        %v591 = vunpack.c.h.b16 %v490
        %v592 = vunpack.c.l.b16 %v491
        %v593 = vunpack.c.h.b16 %v491
        %v594 = vunpack.c.l.b16 %v492
        %v595 = vunpack.c.h.b16 %v492
        %v596 = vunpack.c.l.b16 %v493
        %v597 = vunpack.c.h.b16 %v493
        %v598 = vunpack.c.l.b16 %v494
        %v599 = vunpack.c.h.b16 %v494
        %v600 = vunpack.c.l.b16 %v495
        %v601 = vunpack.c.h.b16 %v495
        %v602 = vunpack.c.l.b16 %v496
        %v603 = vunpack.c.h.b16 %v496
        %v604 = vunpack.c.l.b16 %v497
        %v605 = vunpack.c.h.b16 %v497
        %v606 = vunpack.c.l.b16 %v498
        %v607 = vunpack.c.h.b16 %v498
        %v608 = vunpack.c.l.b16 %v499
        %v609 = vunpack.c.h.b16 %v499
        %v610 = vunpack.c.l.b16 %v500
        %v611 = vunpack.c.h.b16 %v500
        %v612 = vunpack.c.l.b16 %v501
        %v613 = vunpack.c.h.b16 %v501
        %v614 = vunpack.c.l.b16 %v502
        %v615 = vunpack.c.h.b16 %v502
        %v616 = vunpack.c.l.b16 %v503
        %v617 = vunpack.c.h.b16 %v503
        %v618 = vunpack.c.l.b16 %v504
        %v619 = vunpack.c.h.b16 %v504
        %v620 = vunpack.c.l.b16 %v505
        %v621 = vunpack.c.h.b16 %v505
        %v622 = vunpack.c.l.b16 %v506
        %v623 = vunpack.c.h.b16 %v506
        %v624 = vunpack.c.l.b16 %v507
        %v625 = vunpack.c.h.b16 %v507
        %v626 = vpack.c.b16 %v566, %v562
        %v627 = vpack.c.b16 %v567, %v563
        %v628 = vpack.c.b16 %v568, %v564
        %v629 = vpack.c.b16 %v569, %v565
        %v630 = vpack.c.b16 %v574, %v570
        %v631 = vpack.c.b16 %v575, %v571
        %v632 = vpack.c.b16 %v576, %v572
        %v633 = vpack.c.b16 %v577, %v573
        %v634 = vpack.c.b16 %v582, %v578
        %v635 = vpack.c.b16 %v583, %v579
        %v636 = vpack.c.b16 %v584, %v580
        %v637 = vpack.c.b16 %v585, %v581
        %v638 = vpack.c.b16 %v590, %v586
        %v639 = vpack.c.b16 %v591, %v587
        %v640 = vpack.c.b16 %v592, %v588
        %v641 = vpack.c.b16 %v593, %v589
        %v642 = vpack.c.b16 %v598, %v594
        %v643 = vpack.c.b16 %v599, %v595
        %v644 = vpack.c.b16 %v600, %v596
        %v645 = vpack.c.b16 %v601, %v597
        %v646 = vpack.c.b16 %v606, %v602
        %v647 = vpack.c.b16 %v607, %v603
        %v648 = vpack.c.b16 %v608, %v604
        %v649 = vpack.c.b16 %v609, %v605
        %v650 = vpack.c.b16 %v614, %v610
        %v651 = vpack.c.b16 %v615, %v611
        %v652 = vpack.c.b16 %v616, %v612
        %v653 = vpack.c.b16 %v617, %v613
        %v654 = vpack.c.b16 %v622, %v618
        %v655 = vpack.c.b16 %v623, %v619
        %v656 = vpack.c.b16 %v624, %v620
        %v657 = vpack.c.b16 %v625, %v621
        %690 = vmatprep.subr.bf16.mxu0 %v627
        %691 = vmatpush1.bf16.msra.mxu0 %v626
        %692 = vmatprep.subr.bf16.mxu0 %v631
        %693 = vmatpush1.bf16.msra.mxu0 %v630
        %694 = vmatprep.subr.bf16.mxu0 %v635
        %695 = vmatpush1.bf16.msra.mxu0 %v634
        %696 = vmatprep.subr.bf16.mxu0 %v639
        %697 = vmatpush1.bf16.msra.mxu0 %v638
        %698 = vmatprep.subr.bf16.mxu0 %v643
        %699 = vmatpush1.bf16.msra.mxu0 %v642
        %700 = vmatprep.subr.bf16.mxu0 %v647
        %701 = vmatpush1.bf16.msra.mxu0 %v646
        %702 = vmatprep.subr.bf16.mxu0 %v651
        %703 = vmatpush1.bf16.msra.mxu0 %v650
        %704 = vmatprep.subr.bf16.mxu0 %v655
        %705 = vmatpush1.bf16.msra.mxu0 %v654
        %706 = vmatprep.subr.bf16.mxu0 0
        %707 = vmatpush1.bf16.msra.mxu0 0
        %708 = vmatprep.subr.bf16.mxu0 0
        %709 = vmatpush1.bf16.msra.mxu0 0
        %710 = vmatprep.subr.bf16.mxu0 0
        %711 = vmatpush1.bf16.msra.mxu0 0
        %712 = vmatprep.subr.bf16.mxu0 0
        %713 = vmatpush1.bf16.msra.mxu0 0
        %714 = vmatprep.subr.bf16.mxu0 0
        %715 = vmatpush1.bf16.msra.mxu0 0
        %716 = vmatprep.subr.bf16.mxu0 0
        %717 = vmatpush1.bf16.msra.mxu0 0
        %718 = vmatprep.subr.bf16.mxu0 0
        %719 = vmatpush1.bf16.msra.mxu0 0
        %720 = vmatprep.subr.bf16.mxu0 0
        %721 = vmatpush1.bf16.msra.mxu0 0
        %722 = vmatprep.mubr.bf16.mxu0 0
        %723 = vmatmul.mubr.bf16.gmra.mrb[0].mxu0 %v468
        %v724 = vpop.f32.mrb[0].mxu0
        %v725 = vadd.f32 %v513, %v724
        %v726 = vpop.f32.mrb[0].mxu0
        %v727 = vadd.f32 %v517, %v726
        %v728 = vpop.f32.mrb[0].mxu0
        %v729 = vadd.f32 %v513, %v728
        %v730 = vpop.f32.mrb[0].mxu0
        %v731 = vadd.f32 %v517, %v730
        %732 = vmatprep.mubr.bf16.mxu0 0
        %733 = vmatmul.mubr.bf16.gmra.mrb[0].mxu0 %v469
        %v734 = vpop.f32.mrb[0].mxu0
        %v735 = vadd.f32 %v513, %v734
        %v736 = vpop.f32.mrb[0].mxu0
        %v737 = vadd.f32 %v517, %v736
        %v738 = vpop.f32.mrb[0].mxu0
        %v739 = vadd.f32 %v513, %v738
        %v740 = vpop.f32.mrb[0].mxu0
        %v741 = vadd.f32 %v517, %v740
        %742 = vmatprep.mubr.bf16.mxu0 0
        %743 = vmatmul.mubr.bf16.gmra.mrb[0].mxu0 %v470
        %v744 = vpop.f32.mrb[0].mxu0
        %v745 = vadd.f32 %v513, %v744
        %v746 = vpop.f32.mrb[0].mxu0
        %v747 = vadd.f32 %v517, %v746
        %v748 = vpop.f32.mrb[0].mxu0
        %v749 = vadd.f32 %v513, %v748
        %v750 = vpop.f32.mrb[0].mxu0
        %v751 = vadd.f32 %v517, %v750
        %752 = vmatprep.mubr.bf16.mxu0 0
        %753 = vmatmul.mubr.bf16.gmra.mrb[0].mxu0 %v471
        %v754 = vpop.f32.mrb[0].mxu0
        %v755 = vadd.f32 %v513, %v754
        %v756 = vpop.f32.mrb[0].mxu0
        %v757 = vadd.f32 %v517, %v756
        %v758 = vpop.f32.mrb[0].mxu0
        %v759 = vadd.f32 %v513, %v758
        %v760 = vpop.f32.mrb[0].mxu0
        %v761 = vadd.f32 %v517, %v760
        %762 = vmatprep.mubr.bf16.mxu0 0
        %763 = vmatmul.mubr.bf16.gmra.mrb[0].mxu0 %v472
        %v764 = vpop.f32.mrb[0].mxu0
        %v765 = vadd.f32 %v513, %v764
        %v766 = vpop.f32.mrb[0].mxu0
        %v767 = vadd.f32 %v517, %v766
        %v768 = vpop.f32.mrb[0].mxu0
        %v769 = vadd.f32 %v513, %v768
        %v770 = vpop.f32.mrb[0].mxu0
        %v771 = vadd.f32 %v517, %v770
        %772 = vmatprep.mubr.bf16.mxu0 0
        %773 = vmatmul.mubr.bf16.gmra.mrb[0].mxu0 %v473
        %v774 = vpop.f32.mrb[0].mxu0
        %v775 = vadd.f32 %v513, %v774
        %v776 = vpop.f32.mrb[0].mxu0
        %v777 = vadd.f32 %v517, %v776
        %v778 = vpop.f32.mrb[0].mxu0
        %v779 = vadd.f32 %v513, %v778
        %v780 = vpop.f32.mrb[0].mxu0
        %v781 = vadd.f32 %v517, %v780
        %782 = vmatprep.mubr.bf16.mxu0 0
        %783 = vmatmul.mubr.bf16.gmra.mrb[0].mxu0 %v474
        %v784 = vpop.f32.mrb[0].mxu0
        %v785 = vadd.f32 %v513, %v784
        %v786 = vpop.f32.mrb[0].mxu0
        %v787 = vadd.f32 %v517, %v786
        %v788 = vpop.f32.mrb[0].mxu0
        %v789 = vadd.f32 %v513, %v788
        %v790 = vpop.f32.mrb[0].mxu0
        %v791 = vadd.f32 %v517, %v790
        %792 = vmatprep.mubr.bf16.mxu0 0
        %793 = vmatmul.mubr.bf16.gmra.mrb[0].mxu0 %v475
        %v794 = vpop.f32.mrb[0].mxu0
        %v795 = vadd.f32 %v513, %v794
        %v796 = vpop.f32.mrb[0].mxu0
        %v797 = vadd.f32 %v517, %v796
        %v798 = vpop.f32.mrb[0].mxu0
        %v799 = vadd.f32 %v513, %v798
        %v800 = vpop.f32.mrb[0].mxu0
        %v801 = vadd.f32 %v517, %v800
        %802 = vdwg.mxu0
        %803 = vmatprep.subr.bf16.mxu0 %v629
        %804 = vmatpush1.bf16.msra.mxu0 %v628
        %805 = vmatprep.subr.bf16.mxu0 %v633
        %806 = vmatpush1.bf16.msra.mxu0 %v632
        %807 = vmatprep.subr.bf16.mxu0 %v637
        %808 = vmatpush1.bf16.msra.mxu0 %v636
        %809 = vmatprep.subr.bf16.mxu0 %v641
        %810 = vmatpush1.bf16.msra.mxu0 %v640
        %811 = vmatprep.subr.bf16.mxu0 %v645
        %812 = vmatpush1.bf16.msra.mxu0 %v644
        %813 = vmatprep.subr.bf16.mxu0 %v649
        %814 = vmatpush1.bf16.msra.mxu0 %v648
        %815 = vmatprep.subr.bf16.mxu0 %v653
        %816 = vmatpush1.bf16.msra.mxu0 %v652
        %817 = vmatprep.subr.bf16.mxu0 %v657
        %818 = vmatpush1.bf16.msra.mxu0 %v656
        %819 = vmatprep.subr.bf16.mxu0 0
        %820 = vmatpush1.bf16.msra.mxu0 0
        %821 = vmatprep.subr.bf16.mxu0 0
        %822 = vmatpush1.bf16.msra.mxu0 0
        %823 = vmatprep.subr.bf16.mxu0 0
        %824 = vmatpush1.bf16.msra.mxu0 0
        %825 = vmatprep.subr.bf16.mxu0 0
        %826 = vmatpush1.bf16.msra.mxu0 0
        %827 = vmatprep.subr.bf16.mxu0 0
        %828 = vmatpush1.bf16.msra.mxu0 0
        %829 = vmatprep.subr.bf16.mxu0 0
        %830 = vmatpush1.bf16.msra.mxu0 0
        %831 = vmatprep.subr.bf16.mxu0 0
        %832 = vmatpush1.bf16.msra.mxu0 0
        %833 = vmatprep.subr.bf16.mxu0 0
        %834 = vmatpush1.bf16.msra.mxu0 0
        %835 = vmatprep.mubr.bf16.mxu0 0
        %836 = vmatmul.mubr.bf16.gmra.mrb[0].mxu0 %v468
        %v837 = vpop.f32.mrb[0].mxu0
        %v838 = vadd.f32 %v521, %v837
        %v839 = vpop.f32.mrb[0].mxu0
        %v840 = vadd.f32 %v525, %v839
        %v841 = vpop.f32.mrb[0].mxu0
        %v842 = vadd.f32 %v521, %v841
        %v843 = vpop.f32.mrb[0].mxu0
        %v844 = vadd.f32 %v525, %v843
        %845 = vmatprep.mubr.bf16.mxu0 0
        %846 = vmatmul.mubr.bf16.gmra.mrb[0].mxu0 %v469
        %v847 = vpop.f32.mrb[0].mxu0
        %v848 = vadd.f32 %v521, %v847
        %v849 = vpop.f32.mrb[0].mxu0
        %v850 = vadd.f32 %v525, %v849
        %v851 = vpop.f32.mrb[0].mxu0
        %v852 = vadd.f32 %v521, %v851
        %v853 = vpop.f32.mrb[0].mxu0
        %v854 = vadd.f32 %v525, %v853
        %855 = vmatprep.mubr.bf16.mxu0 0
        %856 = vmatmul.mubr.bf16.gmra.mrb[0].mxu0 %v470
        %v857 = vpop.f32.mrb[0].mxu0
        %v858 = vadd.f32 %v521, %v857
        %v859 = vpop.f32.mrb[0].mxu0
        %v860 = vadd.f32 %v525, %v859
        %v861 = vpop.f32.mrb[0].mxu0
        %v862 = vadd.f32 %v521, %v861
        %v863 = vpop.f32.mrb[0].mxu0
        %v864 = vadd.f32 %v525, %v863
        %865 = vmatprep.mubr.bf16.mxu0 0
        %866 = vmatmul.mubr.bf16.gmra.mrb[0].mxu0 %v471
        %v867 = vpop.f32.mrb[0].mxu0
        %v868 = vadd.f32 %v521, %v867
        %v869 = vpop.f32.mrb[0].mxu0
        %v870 = vadd.f32 %v525, %v869
        %v871 = vpop.f32.mrb[0].mxu0
        %v872 = vadd.f32 %v521, %v871
        %v873 = vpop.f32.mrb[0].mxu0
        %v874 = vadd.f32 %v525, %v873
        %875 = vmatprep.mubr.bf16.mxu0 0
        %876 = vmatmul.mubr.bf16.gmra.mrb[0].mxu0 %v472
        %v877 = vpop.f32.mrb[0].mxu0
        %v878 = vadd.f32 %v521, %v877
        %v879 = vpop.f32.mrb[0].mxu0
        %v880 = vadd.f32 %v525, %v879
        %v881 = vpop.f32.mrb[0].mxu0
        %v882 = vadd.f32 %v521, %v881
        %v883 = vpop.f32.mrb[0].mxu0
        %v884 = vadd.f32 %v525, %v883
        %885 = vmatprep.mubr.bf16.mxu0 0
        %886 = vmatmul.mubr.bf16.gmra.mrb[0].mxu0 %v473
        %v887 = vpop.f32.mrb[0].mxu0
        %v888 = vadd.f32 %v521, %v887
        %v889 = vpop.f32.mrb[0].mxu0
        %v890 = vadd.f32 %v525, %v889
        %v891 = vpop.f32.mrb[0].mxu0
        %v892 = vadd.f32 %v521, %v891
        %v893 = vpop.f32.mrb[0].mxu0
        %v894 = vadd.f32 %v525, %v893
        %895 = vmatprep.mubr.bf16.mxu0 0
        %896 = vmatmul.mubr.bf16.gmra.mrb[0].mxu0 %v474
        %v897 = vpop.f32.mrb[0].mxu0
        %v898 = vadd.f32 %v521, %v897
        %v899 = vpop.f32.mrb[0].mxu0
        %v900 = vadd.f32 %v525, %v899
        %v901 = vpop.f32.mrb[0].mxu0
        %v902 = vadd.f32 %v521, %v901
        %v903 = vpop.f32.mrb[0].mxu0
        %v904 = vadd.f32 %v525, %v903
        %905 = vmatprep.mubr.bf16.mxu0 0
        %906 = vmatmul.mubr.bf16.gmra.mrb[0].mxu0 %v475
        %v907 = vpop.f32.mrb[0].mxu0
        %v908 = vadd.f32 %v521, %v907
        %v909 = vpop.f32.mrb[0].mxu0
        %v910 = vadd.f32 %v525, %v909
        %v911 = vpop.f32.mrb[0].mxu0
        %v912 = vadd.f32 %v521, %v911
        %v913 = vpop.f32.mrb[0].mxu0
        %v914 = vadd.f32 %v525, %v913
        %915 = vdwg.mxu0
        %v916 = vmax.f32 %v725, 0.0
        %v917 = vmax.f32 %v727, 0.0
        %v918 = vmax.f32 %v838, 0.0
        %v919 = vmax.f32 %v840, 0.0
        %v920 = vmax.f32 %v729, 0.0
        %v921 = vmax.f32 %v731, 0.0
        %v922 = vmax.f32 %v842, 0.0
        %v923 = vmax.f32 %v844, 0.0
        %v924 = vmax.f32 %v735, 0.0
        %v925 = vmax.f32 %v737, 0.0
        %v926 = vmax.f32 %v848, 0.0
        %v927 = vmax.f32 %v850, 0.0
        %v928 = vmax.f32 %v739, 0.0
        %v929 = vmax.f32 %v741, 0.0
        %v930 = vmax.f32 %v852, 0.0
        %v931 = vmax.f32 %v854, 0.0
        %v932 = vmax.f32 %v745, 0.0
        %v933 = vmax.f32 %v747, 0.0
        %v934 = vmax.f32 %v858, 0.0
        %v935 = vmax.f32 %v860, 0.0
        %v936 = vmax.f32 %v749, 0.0
        %v937 = vmax.f32 %v751, 0.0
        %v938 = vmax.f32 %v862, 0.0
        %v939 = vmax.f32 %v864, 0.0
        %v940 = vmax.f32 %v755, 0.0
        %v941 = vmax.f32 %v757, 0.0
        %v942 = vmax.f32 %v868, 0.0
        %v943 = vmax.f32 %v870, 0.0
        %v944 = vmax.f32 %v759, 0.0
        %v945 = vmax.f32 %v761, 0.0
        %v946 = vmax.f32 %v872, 0.0
        %v947 = vmax.f32 %v874, 0.0
        %v948 = vmax.f32 %v765, 0.0
        %v949 = vmax.f32 %v767, 0.0
        %v950 = vmax.f32 %v878, 0.0
        %v951 = vmax.f32 %v880, 0.0
        %v952 = vmax.f32 %v769, 0.0
        %v953 = vmax.f32 %v771, 0.0
        %v954 = vmax.f32 %v882, 0.0
        %v955 = vmax.f32 %v884, 0.0
        %v956 = vmax.f32 %v775, 0.0
        %v957 = vmax.f32 %v777, 0.0
        %v958 = vmax.f32 %v888, 0.0
        %v959 = vmax.f32 %v890, 0.0
        %v960 = vmax.f32 %v779, 0.0
        %v961 = vmax.f32 %v781, 0.0
        %v962 = vmax.f32 %v892, 0.0
        %v963 = vmax.f32 %v894, 0.0
        %v964 = vmax.f32 %v785, 0.0
        %v965 = vmax.f32 %v787, 0.0
        %v966 = vmax.f32 %v898, 0.0
        %v967 = vmax.f32 %v900, 0.0
        %v968 = vmax.f32 %v789, 0.0
        %v969 = vmax.f32 %v791, 0.0
        %v970 = vmax.f32 %v902, 0.0
        %v971 = vmax.f32 %v904, 0.0
        %v972 = vmax.f32 %v795, 0.0
        %v973 = vmax.f32 %v797, 0.0
        %v974 = vmax.f32 %v908, 0.0
        %v975 = vmax.f32 %v910, 0.0
        %v976 = vmax.f32 %v799, 0.0
        %v977 = vmax.f32 %v801, 0.0
        %v978 = vmax.f32 %v912, 0.0
        %v979 = vmax.f32 %v914, 0.0
        %v980 = vld [vmem:[#allocation8] sm:$0xff]
        %v981 = vld [vmem:[#allocation8 + $0x8] sm:$0xff]
        %v982 = vld [vmem:[#allocation8 + $0x10] sm:$0xff]
        %v983 = vld [vmem:[#allocation8 + $0x18] sm:$0xff]
        %v984 = vld [vmem:[#allocation8 + $0x20] sm:$0xff]
        %v985 = vld [vmem:[#allocation8 + $0x28] sm:$0xff]
        %v986 = vld [vmem:[#allocation8 + $0x30] sm:$0xff]
        %v987 = vld [vmem:[#allocation8 + $0x38] sm:$0xff]
        %v988 = vld [vmem:[#allocation8 + $0x40] sm:$0xff]
        %v989 = vld [vmem:[#allocation8 + $0x48] sm:$0xff]
        %v990 = vld [vmem:[#allocation8 + $0x50] sm:$0xff]
        %v991 = vld [vmem:[#allocation8 + $0x58] sm:$0xff]
        %v992 = vld [vmem:[#allocation8 + $0x60] sm:$0xff]
        %v993 = vld [vmem:[#allocation8 + $0x68] sm:$0xff]
        %v994 = vld [vmem:[#allocation8 + $0x70] sm:$0xff]
        %v995 = vld [vmem:[#allocation8 + $0x78] sm:$0xff]
        %v996 = vld [vmem:[#allocation8 + $0x80] sm:$0xff]
        %v997 = vld [vmem:[#allocation8 + $0x88] sm:$0xff]
        %v998 = vld [vmem:[#allocation8 + $0x90] sm:$0xff]
        %v999 = vld [vmem:[#allocation8 + $0x98] sm:$0xff]
        %v1000 = vld [vmem:[#allocation8 + $0xa0] sm:$0xff]
        %v1001 = vld [vmem:[#allocation8 + $0xa8] sm:$0xff]
        %v1002 = vld [vmem:[#allocation8 + $0xb0] sm:$0xff]
        %v1003 = vld [vmem:[#allocation8 + $0xb8] sm:$0xff]
        %v1004 = vld [vmem:[#allocation8 + $0xc0] sm:$0xff]
        %v1005 = vld [vmem:[#allocation8 + $0xc8] sm:$0xff]
        %v1006 = vld [vmem:[#allocation8 + $0xd0] sm:$0xff]
        %v1007 = vld [vmem:[#allocation8 + $0xd8] sm:$0xff]
        %v1008 = vld [vmem:[#allocation8 + $0xe0] sm:$0xff]
        %v1009 = vld [vmem:[#allocation8 + $0xe8] sm:$0xff]
        %v1010 = vld [vmem:[#allocation8 + $0xf0] sm:$0xff]
        %v1011 = vld [vmem:[#allocation8 + $0xf8] sm:$0xff]
        %v1012 = vld [vmem:[%s4] sm:$0x1]
        %v1014 = vlaneseq
        %v1015 = vshrl.u32 %v1014, 7
        %v1016 = vsub.s32 0, %v1015
        %v1017 = vrot.slane %v1012, %v1016
        %1019 = vmatprep.subr.mxu0 0.0
        %1020 = vmatpush1.msra.mxu0 %v980
        %1021 = vmatprep.subr.mxu0 0.0
        %1022 = vmatpush1.msra.mxu0 %v981
        %1023 = vmatprep.subr.mxu0 0.0
        %1024 = vmatpush1.msra.mxu0 %v982
        %1025 = vmatprep.subr.mxu0 0.0
        %1026 = vmatpush1.msra.mxu0 %v983
        %1027 = vmatprep.subr.mxu0 0.0
        %1028 = vmatpush1.msra.mxu0 %v984
        %1029 = vmatprep.subr.mxu0 0.0
        %1030 = vmatpush1.msra.mxu0 %v985
        %1031 = vmatprep.subr.mxu0 0.0
        %1032 = vmatpush1.msra.mxu0 %v986
        %1033 = vmatprep.subr.mxu0 0.0
        %1034 = vmatpush1.msra.mxu0 %v987
        %1035 = vmatprep.subr.mxu0 0.0
        %1036 = vmatpush1.msra.mxu0 %v988
        %1037 = vmatprep.subr.mxu0 0.0
        %1038 = vmatpush1.msra.mxu0 %v989
        %1039 = vmatprep.subr.mxu0 0.0
        %1040 = vmatpush1.msra.mxu0 %v990
        %1041 = vmatprep.subr.mxu0 0.0
        %1042 = vmatpush1.msra.mxu0 %v991
        %1043 = vmatprep.subr.mxu0 0.0
        %1044 = vmatpush1.msra.mxu0 %v992
        %1045 = vmatprep.subr.mxu0 0.0
        %1046 = vmatpush1.msra.mxu0 %v993
        %1047 = vmatprep.subr.mxu0 0.0
        %1048 = vmatpush1.msra.mxu0 %v994
        %1049 = vmatprep.subr.mxu0 0.0
        %1050 = vmatpush1.msra.mxu0 %v995
        %1051 = vmatprep.subr.mxu0 0.0
        %1052 = vmatpush1.msra.mxu0 %v996
        %1053 = vmatprep.subr.mxu0 0.0
        %1054 = vmatpush1.msra.mxu0 %v997
        %1055 = vmatprep.subr.mxu0 0.0
        %1056 = vmatpush1.msra.mxu0 %v998
        %1057 = vmatprep.subr.mxu0 0.0
        %1058 = vmatpush1.msra.mxu0 %v999
        %1059 = vmatprep.subr.mxu0 0.0
        %1060 = vmatpush1.msra.mxu0 %v1000
        %1061 = vmatprep.subr.mxu0 0.0
        %1062 = vmatpush1.msra.mxu0 %v1001
        %1063 = vmatprep.subr.mxu0 0.0
        %1064 = vmatpush1.msra.mxu0 %v1002
        %1065 = vmatprep.subr.mxu0 0.0
        %1066 = vmatpush1.msra.mxu0 %v1003
        %1067 = vmatprep.subr.mxu0 0.0
        %1068 = vmatpush1.msra.mxu0 %v1004
        %1069 = vmatprep.subr.mxu0 0.0
        %1070 = vmatpush1.msra.mxu0 %v1005
        %1071 = vmatprep.subr.mxu0 0.0
        %1072 = vmatpush1.msra.mxu0 %v1006
        %1073 = vmatprep.subr.mxu0 0.0
        %1074 = vmatpush1.msra.mxu0 %v1007
        %1075 = vmatprep.subr.mxu0 0.0
        %1076 = vmatpush1.msra.mxu0 %v1008
        %1077 = vmatprep.subr.mxu0 0.0
        %1078 = vmatpush1.msra.mxu0 %v1009
        %1079 = vmatprep.subr.mxu0 0.0
        %1080 = vmatpush1.msra.mxu0 %v1010
        %1081 = vmatprep.subr.mxu0 0.0
        %1082 = vmatpush1.msra.mxu0 %v1011
        %1083 = vmatprep.mubr.f32.mxu0 %v917
        %1084 = vmatmul.mubr.f32.gmra.mrb[0].mxu0 %v916
        %v1085 = vpop.f32.mrb[0].mxu0
        %v1086 = vadd.f32 %v1017, %v1085
        %v1087 = vpop.f32.mrb[0].mxu0
        %1088 = vmatprep.mubr.f32.mxu0 %v921
        %1089 = vmatmul.mubr.f32.gmra.mrb[0].mxu0 %v920
        %v1090 = vpop.f32.mrb[0].mxu0
        %v1091 = vadd.f32 %v1017, %v1090
        %v1092 = vpop.f32.mrb[0].mxu0
        %1093 = vmatprep.mubr.f32.mxu0 %v925
        %1094 = vmatmul.mubr.f32.gmra.mrb[0].mxu0 %v924
        %v1095 = vpop.f32.mrb[0].mxu0
        %v1096 = vadd.f32 %v1017, %v1095
        %v1097 = vpop.f32.mrb[0].mxu0
        %1098 = vmatprep.mubr.f32.mxu0 %v929
        %1099 = vmatmul.mubr.f32.gmra.mrb[0].mxu0 %v928
        %v1100 = vpop.f32.mrb[0].mxu0
        %v1101 = vadd.f32 %v1017, %v1100
        %v1102 = vpop.f32.mrb[0].mxu0
        %1103 = vmatprep.mubr.f32.mxu0 %v933
        %1104 = vmatmul.mubr.f32.gmra.mrb[0].mxu0 %v932
        %v1105 = vpop.f32.mrb[0].mxu0
        %v1106 = vadd.f32 %v1017, %v1105
        %v1107 = vpop.f32.mrb[0].mxu0
        %1108 = vmatprep.mubr.f32.mxu0 %v937
        %1109 = vmatmul.mubr.f32.gmra.mrb[0].mxu0 %v936
        %v1110 = vpop.f32.mrb[0].mxu0
        %v1111 = vadd.f32 %v1017, %v1110
        %v1112 = vpop.f32.mrb[0].mxu0
        %1113 = vmatprep.mubr.f32.mxu0 %v941
        %1114 = vmatmul.mubr.f32.gmra.mrb[0].mxu0 %v940
        %v1115 = vpop.f32.mrb[0].mxu0
        %v1116 = vadd.f32 %v1017, %v1115
        %v1117 = vpop.f32.mrb[0].mxu0
        %1118 = vmatprep.mubr.f32.mxu0 %v945
        %1119 = vmatmul.mubr.f32.gmra.mrb[0].mxu0 %v944
        %v1120 = vpop.f32.mrb[0].mxu0
        %v1121 = vadd.f32 %v1017, %v1120
        %v1122 = vpop.f32.mrb[0].mxu0
        %1123 = vmatprep.mubr.f32.mxu0 %v949
        %1124 = vmatmul.mubr.f32.gmra.mrb[0].mxu0 %v948
        %v1125 = vpop.f32.mrb[0].mxu0
        %v1126 = vadd.f32 %v1017, %v1125
        %v1127 = vpop.f32.mrb[0].mxu0
        %1128 = vmatprep.mubr.f32.mxu0 %v953
        %1129 = vmatmul.mubr.f32.gmra.mrb[0].mxu0 %v952
        %v1130 = vpop.f32.mrb[0].mxu0
        %v1131 = vadd.f32 %v1017, %v1130
        %v1132 = vpop.f32.mrb[0].mxu0
        %1133 = vmatprep.mubr.f32.mxu0 %v957
        %1134 = vmatmul.mubr.f32.gmra.mrb[0].mxu0 %v956
        %v1135 = vpop.f32.mrb[0].mxu0
        %v1136 = vadd.f32 %v1017, %v1135
        %v1137 = vpop.f32.mrb[0].mxu0
        %1138 = vmatprep.mubr.f32.mxu0 %v961
        %1139 = vmatmul.mubr.f32.gmra.mrb[0].mxu0 %v960
        %v1140 = vpop.f32.mrb[0].mxu0
        %v1141 = vadd.f32 %v1017, %v1140
        %v1142 = vpop.f32.mrb[0].mxu0
        %1143 = vmatprep.mubr.f32.mxu0 %v965
        %1144 = vmatmul.mubr.f32.gmra.mrb[0].mxu0 %v964
        %v1145 = vpop.f32.mrb[0].mxu0
        %v1146 = vadd.f32 %v1017, %v1145
        %v1147 = vpop.f32.mrb[0].mxu0
        %1148 = vmatprep.mubr.f32.mxu0 %v969
        %1149 = vmatmul.mubr.f32.gmra.mrb[0].mxu0 %v968
        %v1150 = vpop.f32.mrb[0].mxu0
        %v1151 = vadd.f32 %v1017, %v1150
        %v1152 = vpop.f32.mrb[0].mxu0
        %1153 = vmatprep.mubr.f32.mxu0 %v973
        %1154 = vmatmul.mubr.f32.gmra.mrb[0].mxu0 %v972
        %v1155 = vpop.f32.mrb[0].mxu0
        %v1156 = vadd.f32 %v1017, %v1155
        %v1157 = vpop.f32.mrb[0].mxu0
        %1158 = vmatprep.mubr.f32.mxu0 %v977
        %1159 = vmatmul.mubr.f32.gmra.mrb[0].mxu0 %v976
        %v1160 = vpop.f32.mrb[0].mxu0
        %v1161 = vadd.f32 %v1017, %v1160
        %v1162 = vpop.f32.mrb[0].mxu0
        %1163 = vdwg.mxu0
        %v1164 = vpack.c.bf16 %v922, %v918
        %v1165 = vpack.c.bf16 %v923, %v919
        %v1166 = vpack.c.bf16 %v930, %v926
        %v1167 = vpack.c.bf16 %v931, %v927
        %v1168 = vpack.c.bf16 %v938, %v934
        %v1169 = vpack.c.bf16 %v939, %v935
        %v1170 = vpack.c.bf16 %v946, %v942
        %v1171 = vpack.c.bf16 %v947, %v943
        %v1172 = vpack.c.bf16 %v954, %v950
        %v1173 = vpack.c.bf16 %v955, %v951
        %v1174 = vpack.c.bf16 %v962, %v958
        %v1175 = vpack.c.bf16 %v963, %v959
        %v1176 = vpack.c.bf16 %v970, %v966
        %v1177 = vpack.c.bf16 %v971, %v967
        %v1178 = vpack.c.bf16 %v978, %v974
        %v1179 = vpack.c.bf16 %v979, %v975
        %v1180 = vld [vmem:[#allocation10] sm:$0xf]
        %v1181 = vld [vmem:[#allocation10 + $0x4] sm:$0xf]
        %v1182 = vld [vmem:[#allocation10 + $0x8] sm:$0xf]
        %v1183 = vld [vmem:[#allocation10 + $0xc] sm:$0xf]
        %v1184 = vld [vmem:[#allocation10 + $0x10] sm:$0xf]
        %v1185 = vld [vmem:[#allocation10 + $0x14] sm:$0xf]
        %v1186 = vld [vmem:[#allocation10 + $0x18] sm:$0xf]
        %v1187 = vld [vmem:[#allocation10 + $0x1c] sm:$0xf]
        %v1188 = vld [vmem:[#allocation10 + $0x20] sm:$0xf]
        %v1189 = vld [vmem:[#allocation10 + $0x24] sm:$0xf]
        %v1190 = vld [vmem:[#allocation10 + $0x28] sm:$0xf]
        %v1191 = vld [vmem:[#allocation10 + $0x2c] sm:$0xf]
        %v1192 = vld [vmem:[#allocation10 + $0x30] sm:$0xf]
        %v1193 = vld [vmem:[#allocation10 + $0x34] sm:$0xf]
        %v1194 = vld [vmem:[#allocation10 + $0x38] sm:$0xf]
        %v1195 = vld [vmem:[#allocation10 + $0x3c] sm:$0xf]
        %v1196 = vld [vmem:[#allocation10 + $0x40] sm:$0xf]
        %v1197 = vld [vmem:[#allocation10 + $0x44] sm:$0xf]
        %v1198 = vld [vmem:[#allocation10 + $0x48] sm:$0xf]
        %v1199 = vld [vmem:[#allocation10 + $0x4c] sm:$0xf]
        %v1200 = vld [vmem:[#allocation10 + $0x50] sm:$0xf]
        %v1201 = vld [vmem:[#allocation10 + $0x54] sm:$0xf]
        %v1202 = vld [vmem:[#allocation10 + $0x58] sm:$0xf]
        %v1203 = vld [vmem:[#allocation10 + $0x5c] sm:$0xf]
        %v1204 = vld [vmem:[#allocation10 + $0x60] sm:$0xf]
        %v1205 = vld [vmem:[#allocation10 + $0x64] sm:$0xf]
        %v1206 = vld [vmem:[#allocation10 + $0x68] sm:$0xf]
        %v1207 = vld [vmem:[#allocation10 + $0x6c] sm:$0xf]
        %v1208 = vld [vmem:[#allocation10 + $0x70] sm:$0xf]
        %v1209 = vld [vmem:[#allocation10 + $0x74] sm:$0xf]
        %v1210 = vld [vmem:[#allocation10 + $0x78] sm:$0xf]
        %v1211 = vld [vmem:[#allocation10 + $0x7c] sm:$0xf]
        %v1212 = vld [vmem:[%s6] sm:$0x1]
        %v1214 = vlaneseq
        %v1215 = vshrl.u32 %v1214, 7
        %v1216 = vsub.s32 0, %v1215
        %v1217 = vrot.slane %v1212, %v1216
        %v1251 = vunpack.c.l.b16 %v1180
        %v1252 = vunpack.c.l.b16 %v1181
        %v1253 = vunpack.c.l.b16 %v1182
        %v1254 = vunpack.c.l.b16 %v1183
        %v1255 = vunpack.c.l.b16 %v1184
        %v1256 = vunpack.c.l.b16 %v1185
        %v1257 = vunpack.c.l.b16 %v1186
        %v1258 = vunpack.c.l.b16 %v1187
        %v1259 = vunpack.c.l.b16 %v1188
        %v1260 = vunpack.c.l.b16 %v1189
        %v1261 = vunpack.c.l.b16 %v1190
        %v1262 = vunpack.c.l.b16 %v1191
        %v1263 = vunpack.c.l.b16 %v1192
        %v1264 = vunpack.c.l.b16 %v1193
        %v1265 = vunpack.c.l.b16 %v1194
        %v1266 = vunpack.c.l.b16 %v1195
        %v1267 = vunpack.c.l.b16 %v1196
        %v1268 = vunpack.c.l.b16 %v1197
        %v1269 = vunpack.c.l.b16 %v1198
        %v1270 = vunpack.c.l.b16 %v1199
        %v1271 = vunpack.c.l.b16 %v1200
        %v1272 = vunpack.c.l.b16 %v1201
        %v1273 = vunpack.c.l.b16 %v1202
        %v1274 = vunpack.c.l.b16 %v1203
        %v1275 = vunpack.c.l.b16 %v1204
        %v1276 = vunpack.c.l.b16 %v1205
        %v1277 = vunpack.c.l.b16 %v1206
        %v1278 = vunpack.c.l.b16 %v1207
        %v1279 = vunpack.c.l.b16 %v1208
        %v1280 = vunpack.c.l.b16 %v1209
        %v1281 = vunpack.c.l.b16 %v1210
        %v1282 = vunpack.c.l.b16 %v1211
        %v1283 = vpack.c.b16 %v1252, %v1251
        %v1284 = vpack.c.b16 %v1254, %v1253
        %v1285 = vpack.c.b16 %v1256, %v1255
        %v1286 = vpack.c.b16 %v1258, %v1257
        %v1287 = vpack.c.b16 %v1260, %v1259
        %v1288 = vpack.c.b16 %v1262, %v1261
        %v1289 = vpack.c.b16 %v1264, %v1263
        %v1290 = vpack.c.b16 %v1266, %v1265
        %v1291 = vpack.c.b16 %v1268, %v1267
        %v1292 = vpack.c.b16 %v1270, %v1269
        %v1293 = vpack.c.b16 %v1272, %v1271
        %v1294 = vpack.c.b16 %v1274, %v1273
        %v1295 = vpack.c.b16 %v1276, %v1275
        %v1296 = vpack.c.b16 %v1278, %v1277
        %v1297 = vpack.c.b16 %v1280, %v1279
        %v1298 = vpack.c.b16 %v1282, %v1281
        %1315 = vmatprep.subr.bf16.mxu0 0
        %1316 = vmatpush1.bf16.msra.mxu0 %v1283
        %1317 = vmatprep.subr.bf16.mxu0 0
        %1318 = vmatpush1.bf16.msra.mxu0 %v1284
        %1319 = vmatprep.subr.bf16.mxu0 0
        %1320 = vmatpush1.bf16.msra.mxu0 %v1285
        %1321 = vmatprep.subr.bf16.mxu0 0
        %1322 = vmatpush1.bf16.msra.mxu0 %v1286
        %1323 = vmatprep.subr.bf16.mxu0 0
        %1324 = vmatpush1.bf16.msra.mxu0 %v1287
        %1325 = vmatprep.subr.bf16.mxu0 0
        %1326 = vmatpush1.bf16.msra.mxu0 %v1288
        %1327 = vmatprep.subr.bf16.mxu0 0
        %1328 = vmatpush1.bf16.msra.mxu0 %v1289
        %1329 = vmatprep.subr.bf16.mxu0 0
        %1330 = vmatpush1.bf16.msra.mxu0 %v1290
        %1331 = vmatprep.subr.bf16.mxu0 0
        %1332 = vmatpush1.bf16.msra.mxu0 %v1291
        %1333 = vmatprep.subr.bf16.mxu0 0
        %1334 = vmatpush1.bf16.msra.mxu0 %v1292
        %1335 = vmatprep.subr.bf16.mxu0 0
        %1336 = vmatpush1.bf16.msra.mxu0 %v1293
        %1337 = vmatprep.subr.bf16.mxu0 0
        %1338 = vmatpush1.bf16.msra.mxu0 %v1294
        %1339 = vmatprep.subr.bf16.mxu0 0
        %1340 = vmatpush1.bf16.msra.mxu0 %v1295
        %1341 = vmatprep.subr.bf16.mxu0 0
        %1342 = vmatpush1.bf16.msra.mxu0 %v1296
        %1343 = vmatprep.subr.bf16.mxu0 0
        %1344 = vmatpush1.bf16.msra.mxu0 %v1297
        %1345 = vmatprep.subr.bf16.mxu0 0
        %1346 = vmatpush1.bf16.msra.mxu0 %v1298
        %1347 = vmatprep.mubr.bf16.mxu0 %v1165
        %1348 = vmatmul.mubr.bf16.gmra.mrb[0].mxu0 %v1164
        %v1349 = vpop.f32.mrb[0].mxu0
        %v1350 = vadd.f32 %v1217, %v1349
        %v1351 = vpop.f32.mrb[0].mxu0
        %v1352 = vpop.f32.mrb[0].mxu0
        %v1353 = vadd.f32 %v1217, %v1352
        %v1354 = vpop.f32.mrb[0].mxu0
        %1355 = vmatprep.mubr.bf16.mxu0 %v1167
        %1356 = vmatmul.mubr.bf16.gmra.mrb[0].mxu0 %v1166
        %v1357 = vpop.f32.mrb[0].mxu0
        %v1358 = vadd.f32 %v1217, %v1357
        %v1359 = vpop.f32.mrb[0].mxu0
        %v1360 = vpop.f32.mrb[0].mxu0
        %v1361 = vadd.f32 %v1217, %v1360
        %v1362 = vpop.f32.mrb[0].mxu0
        %1363 = vmatprep.mubr.bf16.mxu0 %v1169
        %1364 = vmatmul.mubr.bf16.gmra.mrb[0].mxu0 %v1168
        %v1365 = vpop.f32.mrb[0].mxu0
        %v1366 = vadd.f32 %v1217, %v1365
        %v1367 = vpop.f32.mrb[0].mxu0
        %v1368 = vpop.f32.mrb[0].mxu0
        %v1369 = vadd.f32 %v1217, %v1368
        %v1370 = vpop.f32.mrb[0].mxu0
        %1371 = vmatprep.mubr.bf16.mxu0 %v1171
        %1372 = vmatmul.mubr.bf16.gmra.mrb[0].mxu0 %v1170
        %v1373 = vpop.f32.mrb[0].mxu0
        %v1374 = vadd.f32 %v1217, %v1373
        %v1375 = vpop.f32.mrb[0].mxu0
        %v1376 = vpop.f32.mrb[0].mxu0
        %v1377 = vadd.f32 %v1217, %v1376
        %v1378 = vpop.f32.mrb[0].mxu0
        %1379 = vmatprep.mubr.bf16.mxu0 %v1173
        %1380 = vmatmul.mubr.bf16.gmra.mrb[0].mxu0 %v1172
        %v1381 = vpop.f32.mrb[0].mxu0
        %v1382 = vadd.f32 %v1217, %v1381
        %v1383 = vpop.f32.mrb[0].mxu0
        %v1384 = vpop.f32.mrb[0].mxu0
        %v1385 = vadd.f32 %v1217, %v1384
        %v1386 = vpop.f32.mrb[0].mxu0
        %1387 = vmatprep.mubr.bf16.mxu0 %v1175
        %1388 = vmatmul.mubr.bf16.gmra.mrb[0].mxu0 %v1174
        %v1389 = vpop.f32.mrb[0].mxu0
        %v1390 = vadd.f32 %v1217, %v1389
        %v1391 = vpop.f32.mrb[0].mxu0
        %v1392 = vpop.f32.mrb[0].mxu0
        %v1393 = vadd.f32 %v1217, %v1392
        %v1394 = vpop.f32.mrb[0].mxu0
        %1395 = vmatprep.mubr.bf16.mxu0 %v1177
        %1396 = vmatmul.mubr.bf16.gmra.mrb[0].mxu0 %v1176
        %v1397 = vpop.f32.mrb[0].mxu0
        %v1398 = vadd.f32 %v1217, %v1397
        %v1399 = vpop.f32.mrb[0].mxu0
        %v1400 = vpop.f32.mrb[0].mxu0
        %v1401 = vadd.f32 %v1217, %v1400
        %v1402 = vpop.f32.mrb[0].mxu0
        %1403 = vmatprep.mubr.bf16.mxu0 %v1179
        %1404 = vmatmul.mubr.bf16.gmra.mrb[0].mxu0 %v1178
        %v1405 = vpop.f32.mrb[0].mxu0
        %v1406 = vadd.f32 %v1217, %v1405
        %v1407 = vpop.f32.mrb[0].mxu0
        %v1408 = vpop.f32.mrb[0].mxu0
        %v1409 = vadd.f32 %v1217, %v1408
        %v1410 = vpop.f32.mrb[0].mxu0
        %1411 = vdwg.mxu0
        %v1412 = vmul.f32 %v1086, 1.442695
        %v1413 = vpow.pop %v1412
        %v1414 = vmul.f32 %v1091, 1.442695
        %v1415 = vpow.pop %v1414
        %v1416 = vmul.f32 %v1096, 1.442695
        %v1417 = vpow.pop %v1416
        %v1418 = vmul.f32 %v1101, 1.442695
        %v1419 = vpow.pop %v1418
        %v1420 = vmul.f32 %v1106, 1.442695
        %v1421 = vpow.pop %v1420
        %v1422 = vmul.f32 %v1111, 1.442695
        %v1423 = vpow.pop %v1422
        %v1424 = vmul.f32 %v1116, 1.442695
        %v1425 = vpow.pop %v1424
        %v1426 = vmul.f32 %v1121, 1.442695
        %v1427 = vpow.pop %v1426
        %v1428 = vmul.f32 %v1126, 1.442695
        %v1429 = vpow.pop %v1428
        %v1430 = vmul.f32 %v1131, 1.442695
        %v1431 = vpow.pop %v1430
        %v1432 = vmul.f32 %v1136, 1.442695
        %v1433 = vpow.pop %v1432
        %v1434 = vmul.f32 %v1141, 1.442695
        %v1435 = vpow.pop %v1434
        %v1436 = vmul.f32 %v1146, 1.442695
        %v1437 = vpow.pop %v1436
        %v1438 = vmul.f32 %v1151, 1.442695
        %v1439 = vpow.pop %v1438
        %v1440 = vmul.f32 %v1156, 1.442695
        %v1441 = vpow.pop %v1440
        %v1442 = vmul.f32 %v1161, 1.442695
        %v1443 = vpow.pop %v1442
        %v1444 = vmul.f32 %v452, %v1413
        %v1445 = vmul.f32 %v453, %v1415
        %v1446 = vmul.f32 %v454, %v1417
        %v1447 = vmul.f32 %v455, %v1419
        %v1448 = vmul.f32 %v456, %v1421
        %v1449 = vmul.f32 %v457, %v1423
        %v1450 = vmul.f32 %v458, %v1425
        %v1451 = vmul.f32 %v459, %v1427
        %v1452 = vmul.f32 %v460, %v1429
        %v1453 = vmul.f32 %v461, %v1431
        %v1454 = vmul.f32 %v462, %v1433
        %v1455 = vmul.f32 %v463, %v1435
        %v1456 = vmul.f32 %v464, %v1437
        %v1457 = vmul.f32 %v465, %v1439
        %v1458 = vmul.f32 %v466, %v1441
        %v1459 = vmul.f32 %v467, %v1443
        %v1460 = vadd.f32 %v1444, %v1350
        %v1461 = vadd.f32 %v1445, %v1353
        %v1462 = vadd.f32 %v1446, %v1358
        %v1463 = vadd.f32 %v1447, %v1361
        %v1464 = vadd.f32 %v1448, %v1366
        %v1465 = vadd.f32 %v1449, %v1369
        %v1466 = vadd.f32 %v1450, %v1374
        %v1467 = vadd.f32 %v1451, %v1377
        %v1468 = vadd.f32 %v1452, %v1382
        %v1469 = vadd.f32 %v1453, %v1385
        %v1470 = vadd.f32 %v1454, %v1390
        %v1471 = vadd.f32 %v1455, %v1393
        %v1472 = vadd.f32 %v1456, %v1398
        %v1473 = vadd.f32 %v1457, %v1401
        %v1474 = vadd.f32 %v1458, %v1406
        %v1475 = vadd.f32 %v1459, %v1409
        %1476 = vst [vmem:[%s411] sm:$0xff] %v1460
        %1477 = vst [vmem:[%s411 + $0x8] sm:$0xff] %v1461
        %1478 = vst [vmem:[%s411 + $0x10] sm:$0xff] %v1462
        %1479 = vst [vmem:[%s411 + $0x18] sm:$0xff] %v1463
        %1480 = vst [vmem:[%s411 + $0x20] sm:$0xff] %v1464
        %1481 = vst [vmem:[%s411 + $0x28] sm:$0xff] %v1465
        %1482 = vst [vmem:[%s411 + $0x30] sm:$0xff] %v1466
        %1483 = vst [vmem:[%s411 + $0x38] sm:$0xff] %v1467
        %1484 = vst [vmem:[%s411 + $0x40] sm:$0xff] %v1468
        %1485 = vst [vmem:[%s411 + $0x48] sm:$0xff] %v1469
        %1486 = vst [vmem:[%s411 + $0x50] sm:$0xff] %v1470
        %1487 = vst [vmem:[%s411 + $0x58] sm:$0xff] %v1471
        %1488 = vst [vmem:[%s411 + $0x60] sm:$0xff] %v1472
        %1489 = vst [vmem:[%s411 + $0x68] sm:$0xff] %v1473
        %1490 = vst [vmem:[%s411 + $0x70] sm:$0xff] %v1474
        %1491 = vst [vmem:[%s411 + $0x78] sm:$0xff] %v1475
        %1492 = vst [vmem:[%s418] sm:$0xff] %v1086
        %1493 = vst [vmem:[%s418 + $0x8] sm:$0xff] %v1091
        %1494 = vst [vmem:[%s418 + $0x10] sm:$0xff] %v1096
        %1495 = vst [vmem:[%s418 + $0x18] sm:$0xff] %v1101
        %1496 = vst [vmem:[%s418 + $0x20] sm:$0xff] %v1106
        %1497 = vst [vmem:[%s418 + $0x28] sm:$0xff] %v1111
        %1498 = vst [vmem:[%s418 + $0x30] sm:$0xff] %v1116
        %1499 = vst [vmem:[%s418 + $0x38] sm:$0xff] %v1121
        %1500 = vst [vmem:[%s418 + $0x40] sm:$0xff] %v1126
        %1501 = vst [vmem:[%s418 + $0x48] sm:$0xff] %v1131
        %1502 = vst [vmem:[%s418 + $0x50] sm:$0xff] %v1136
        %1503 = vst [vmem:[%s418 + $0x58] sm:$0xff] %v1141
        %1504 = vst [vmem:[%s418 + $0x60] sm:$0xff] %v1146
        %1505 = vst [vmem:[%s418 + $0x68] sm:$0xff] %v1151
        %1506 = vst [vmem:[%s418 + $0x70] sm:$0xff] %v1156
        %1507 = vst [vmem:[%s418 + $0x78] sm:$0xff] %v1161
        %1508 = vadd.xlane.f32.xlu0 %v1086
        %v1509 = vpop.xlane.xlu0 %1508
        %1510 = vadd.xlane.f32.xlu0 %v1091
        %v1511 = vpop.xlane.xlu0 %1510
        %1512 = vadd.xlane.f32.xlu0 %v1096
        %v1513 = vpop.xlane.xlu0 %1512
        %1514 = vadd.xlane.f32.xlu0 %v1101
        %v1515 = vpop.xlane.xlu0 %1514
        %1516 = vadd.xlane.f32.xlu0 %v1106
        %v1517 = vpop.xlane.xlu0 %1516
        %1518 = vadd.xlane.f32.xlu0 %v1111
        %v1519 = vpop.xlane.xlu0 %1518
        %1520 = vadd.xlane.f32.xlu0 %v1116
        %v1521 = vpop.xlane.xlu0 %1520
        %1522 = vadd.xlane.f32.xlu0 %v1121
        %v1523 = vpop.xlane.xlu0 %1522
        %1524 = vadd.xlane.f32.xlu0 %v1126
        %v1525 = vpop.xlane.xlu0 %1524
        %1526 = vadd.xlane.f32.xlu0 %v1131
        %v1527 = vpop.xlane.xlu0 %1526
        %1528 = vadd.xlane.f32.xlu0 %v1136
        %v1529 = vpop.xlane.xlu0 %1528
        %1530 = vadd.xlane.f32.xlu0 %v1141
        %v1531 = vpop.xlane.xlu0 %1530
        %1532 = vadd.xlane.f32.xlu0 %v1146
        %v1533 = vpop.xlane.xlu0 %1532
        %1534 = vadd.xlane.f32.xlu0 %v1151
        %v1535 = vpop.xlane.xlu0 %1534
        %1536 = vadd.xlane.f32.xlu0 %v1156
        %v1537 = vpop.xlane.xlu0 %1536
        %1538 = vadd.xlane.f32.xlu0 %v1161
        %v1539 = vpop.xlane.xlu0 %1538
        %vm1540 = vcmask 7168
        %1541 = vst.msk [vmem:[%s433] sm:$0xff] %vm1540, %v1509
        %1542 = vst.msk [vmem:[%s433 + $0x8] sm:$0xff] %vm1540, %v1511
        %1543 = vst.msk [vmem:[%s433 + $0x10] sm:$0xff] %vm1540, %v1513
        %1544 = vst.msk [vmem:[%s433 + $0x18] sm:$0xff] %vm1540, %v1515
        %1545 = vst.msk [vmem:[%s433 + $0x20] sm:$0xff] %vm1540, %v1517
        %1546 = vst.msk [vmem:[%s433 + $0x28] sm:$0xff] %vm1540, %v1519
        %1547 = vst.msk [vmem:[%s433 + $0x30] sm:$0xff] %vm1540, %v1521
        %1548 = vst.msk [vmem:[%s433 + $0x38] sm:$0xff] %vm1540, %v1523
        %1549 = vst.msk [vmem:[%s433 + $0x40] sm:$0xff] %vm1540, %v1525
        %1550 = vst.msk [vmem:[%s433 + $0x48] sm:$0xff] %vm1540, %v1527
        %1551 = vst.msk [vmem:[%s433 + $0x50] sm:$0xff] %vm1540, %v1529
        %1552 = vst.msk [vmem:[%s433 + $0x58] sm:$0xff] %vm1540, %v1531
        %1553 = vst.msk [vmem:[%s433 + $0x60] sm:$0xff] %vm1540, %v1533
        %1554 = vst.msk [vmem:[%s433 + $0x68] sm:$0xff] %vm1540, %v1535
        %1555 = vst.msk [vmem:[%s433 + $0x70] sm:$0xff] %vm1540, %v1537
        %1556 = vst.msk [vmem:[%s433 + $0x78] sm:$0xff] %vm1540, %v1539
        %s1557 = sand.u32 %s192, 1
        %s1558 = scalar_lea.sflag [#allocation4], %s1557
        %s1559 = sand.u32 %s192, 1
        %s1560 = smul.addr %s1559, 128
        %s1561 = scalar_lea.vmem [#allocation11], %s1560
        %s1562 = sand.u32 %s218, 1
        %s1563 = scalar_lea.sflag [#allocation13], %s1562
        %s1564 = sand.u32 %s218, 1
        %s1565 = smul.addr %s1564, 128
        %s1566 = scalar_lea.vmem [#allocation12], %s1565
        %s1567 = smul.u32 16, %s32
        %p1568 = scmp.lt.s32.totalorder %s1567, 63
        %s1569 = scalar_select %p1568, %s1567, 63
        %s1570 = smul.addr %s1569, 8
        %s1571 = scalar_lea.vmem %s9, %s1570
        // Predicated region
        $region69: #{affine_coupling_forward.1} parent=47 // pred_check
          %p1572 = pneg %p202
        $region70: #{affine_coupling_forward.1} parent=47 // pred_check_branch
          %1574 = sbr.rel (%p1572) target = $region72
        $region71: #{affine_coupling_forward.1} parent=47 // pred_region
          %s1575 = smul.u32 16, %s32
          %s1577 = ssub.s32 2048, 2048
          %1578 = vsyncadd %s1558, %s1577
          %s1579 = smul.addr %s1575, 2
          %s1580 = sadd.s32 1, %s1579
          %s1581 = smul.addr %s1580, 128
          %s1582 = scalar_lea.hbm %s7, %s1581
          %s1583 = sshll.u32 %s1561, 4
          %s1584 = int_to_ptr.vmem [resolvable:$true] %s1583
          %1589 = dma.vmem_to_hbm [thread:$0]  %s1584, 2048, %s1582, %s1558, 128, 256, 8
        $region72: #{affine_coupling_forward.1} parent=47 // pred_fallthru
          _
        // Predicated region
        $region73: #{affine_coupling_forward.1} parent=47 // pred_check
          %p1590 = pneg %p228
        $region74: #{affine_coupling_forward.1} parent=47 // pred_check_branch
          %1592 = sbr.rel (%p1590) target = $region76
        $region75: #{affine_coupling_forward.1} parent=47 // pred_region
          %s1593 = smul.u32 16, %s32
          %s1595 = ssub.s32 2048, 2048
          %1596 = vsyncadd %s1563, %s1595
          %s1597 = smul.addr %s1593, 128
          %s1598 = scalar_lea.hbm %s8, %s1597
          %s1599 = sshll.u32 %s1566, 4
          %s1600 = int_to_ptr.vmem [resolvable:$true] %s1599
          %1605 = dma.vmem_to_hbm [thread:$0]  %s1600, 2048, %s1598, %s1563, 128, 128, 8
        $region76: #{affine_coupling_forward.1} parent=47 // pred_fallthru
          _
        // Predicated region
        $region77: #{affine_coupling_forward.1} parent=47 // pred_check
          %p1606 = pneg %p254
        $region78: #{affine_coupling_forward.1} parent=47 // pred_check_branch
          %1608 = sbr.rel (%p1606) target = $region80
        $region79: #{affine_coupling_forward.1} parent=47 // pred_region
          %s1609 = smul.u32 16, %s32
        $region80: #{affine_coupling_forward.1} parent=47 // pred_fallthru
          _
      $region48: #{affine_coupling_forward.1} parent=5 // pred_fallthru
        _
      %p1610 = scmp.le.s32.totalorder 2, %s27
      // Predicated region
      $region81: #{affine_coupling_forward.1} parent=5 // pred_check
        %p1611 = pneg %p1610
      $region82: #{affine_coupling_forward.1} parent=5 // pred_check_branch
        %1613 = sbr.rel (%p1611) target = $region84
      $region83: #{affine_coupling_forward.1} parent=5 // pred_region
        %s1614 = ssub.s32 %s27, 2
        // Predicated region
        $region85: #{affine_coupling_forward.1} parent=83 // pred_check
          %p1615 = pneg %p208
        $region86: #{affine_coupling_forward.1} parent=83 // pred_check_branch
          %1617 = sbr.rel (%p1615) target = $region88
        $region87: #{affine_coupling_forward.1} parent=83 // pred_region
          %s1618 = sand.u32 %s193, 1
          %s1619 = scalar_lea.sflag [#allocation4], %s1618
          %s1620 = sand.u32 %s193, 1
          %s1621 = smul.addr %s1620, 128
          %s1622 = scalar_lea.vmem [#allocation11], %s1621
          %1623 = dma.done %s1619, 2048
        $region88: #{affine_coupling_forward.1} parent=83 // pred_fallthru
          _
        // Predicated region
        $region89: #{affine_coupling_forward.1} parent=83 // pred_check
          %p1624 = pneg %p234
        $region90: #{affine_coupling_forward.1} parent=83 // pred_check_branch
          %1626 = sbr.rel (%p1624) target = $region92
        $region91: #{affine_coupling_forward.1} parent=83 // pred_region
          %s1627 = sand.u32 %s219, 1
          %s1628 = scalar_lea.sflag [#allocation13], %s1627
          %s1629 = sand.u32 %s219, 1
          %s1630 = smul.addr %s1629, 128
          %s1631 = scalar_lea.vmem [#allocation12], %s1630
          %1632 = dma.done %s1628, 2048
        $region92: #{affine_coupling_forward.1} parent=83 // pred_fallthru
          _
        // Predicated region
        $region93: #{affine_coupling_forward.1} parent=83 // pred_check
          %p1633 = pneg %p260
        $region94: #{affine_coupling_forward.1} parent=83 // pred_check_branch
          %1635 = sbr.rel (%p1633) target = $region96
        $region95: #{affine_coupling_forward.1} parent=83 // pred_region
          %s1636 = smul.u32 16, %s33
          %p1637 = scmp.lt.s32.totalorder %s1636, 63
          %s1638 = scalar_select %p1637, %s1636, 63
          %s1639 = smul.addr %s1638, 8
          %s1640 = scalar_lea.vmem %s9, %s1639
        $region96: #{affine_coupling_forward.1} parent=83 // pred_fallthru
          _
      $region84: #{affine_coupling_forward.1} parent=5 // pred_fallthru
        _
    $region6: #{affine_coupling_forward.1} parent=1 // loop_footer
      %s31 = sadd.s32 1, %s27
    $region7: #{affine_coupling_forward.1} parent=1 // loop_footer_branch
      %26 = sbr.rel target = $region3
    $region8: #{affine_coupling_forward.1} parent=1 // loop_exit
      _
    %1641 = vsyncpa [#allocation3], 1
    %s1642 = scalar_lea.sflag [#allocation3], 1
    %1643 = vsyncpa %s1642, 1
    %1644 = vsyncpa [#allocation6], 1
    %1645 = vsyncpa [#allocation9], 1
    %1646 = vsyncpa [#allocation4], 1
    %s1647 = scalar_lea.sflag [#allocation4], 1
    %1648 = vsyncpa %s1647, 1
    %1649 = vsyncpa [#allocation13], 1
    %s1650 = scalar_lea.sflag [#allocation13], 1
    %1651 = vsyncpa %s1650, 1

</llo_original>
